<compile_context>
chip_gen: v7x
topology: tpu7x:2x2x1
jax: 0.10.0
libtpu: 0.0.40
codegen_flags: <defaults>
</compile_context>

<pallas_src>
import functools

import jax
import jax.numpy as jnp
from jax.experimental import pallas as pl
from jax.experimental.pallas import tpu as pltpu


def _round_up(a, m):
    return -(-a // m) * m


def _log_softmax(z):
    m = jnp.max(z, axis=-1, keepdims=True)
    zs = z - m
    return zs - jnp.log(jnp.sum(jnp.exp(zs), axis=-1, keepdims=True))


def vmt_loss_kernel(x1_ref, x2_ref, y1_ref, y2_ref, alpha_ref,
                    w1_ref, b1_ref, w2_ref, b2_ref, out_ref,
                    *, n_valid, tn, samples, masked):
    i = pl.program_id(0)                       # row-tile index

    # Big streams arrive as f32 straight from HBM; mixup in f32 (VPU), cast to
    # bf16 only at the MXU input.
    x1 = x1_ref[...]                           # [tn, D] f32
    x2 = x2_ref[...]
    dx = x1 - x2
    y1 = y1_ref[...]                           # [tn, K] f32
    y2 = y2_ref[...]
    dy = y1 - y2

    w1 = w1_ref[...]                           # [D, Hp] bf16 (resident, 1-buffered)
    b1 = b1_ref[...]                           # [1, Hp] f32
    w2 = w2_ref[...]                           # [Hp, K] f32
    b2 = b2_ref[...]                           # [1, K] f32

    def sample_step(s, acc):
        a = alpha_ref[s]                       # [tn, 1] f32, Uniform(0,1)
        # mixup: x1*a + x2*(1-a)  ==  x2 + a*(x1-x2)
        xs = (x2 + a * dx).astype(jnp.bfloat16)
        ys = y2 + a * dy
        # net(xs): D -> Hp -> K  (2-layer MLP; ReLU feature, then logits)
        h = jnp.dot(xs, w1, preferred_element_type=jnp.float32) + b1
        h = jnp.maximum(h, 0.0)
        logits = jnp.dot(h, w2, preferred_element_type=jnp.float32) + b2
        # TODO(synk): VAT_sim_KL_unnormalized source not provided; implemented
        # as per-row KL(softmax(ys) || softmax(logits)) summed over classes, T=1.
        log_p = _log_softmax(ys)
        log_q = _log_softmax(logits)
        kl = jnp.sum(jnp.exp(log_p) * (log_p - log_q), axis=-1, keepdims=True)
        return acc + kl                        # [tn, 1]

    acc = jax.lax.fori_loop(0, samples, sample_step,
                            jnp.zeros((tn, 1), jnp.float32), unroll=True)

    if masked:
        # Ragged last tile: zero rows past the true batch size (static-skipped
        # entirely when tn divides bs).
        row = jax.lax.broadcasted_iota(jnp.int32, acc.shape, 0) + i * tn
        acc = jnp.where(row < n_valid, acc, 0.0)

    # Lane-dense per-tile partial sum (row axis stays megacore-parallel).
    out_ref[...] = jnp.full(out_ref.shape, jnp.sum(acc), jnp.float32)


def _choose_tiling(bs, d, k, hid_pad, samples):
    """Row-tile size + vmem limit from a per-generation VMEM budget."""
    try:
        vmem_cap = int(pltpu.get_tpu_info().vmem_capacity_bytes)
    except Exception:
        vmem_cap = 64 * 1024 * 1024            # conservative (v7x-sized) fallback
    budget = (vmem_cap * 3) // 4               # leave compiler headroom

    # VMEM consumers: double-buffered x1/x2/y1/y2/alpha streams, single-buffered
    # weights, and in-kernel intermediates (dx f32, xs bf16, h f32).
    weight_bytes = 2 * d * hid_pad + 4 * hid_pad + 4 * hid_pad * k + 4 * k
    per_row_bytes = (16 * d + 16 * k + 8 * samples        # pipelined input blocks
                     + 6 * d + 4 * hid_pad + 16 * k)      # intermediates
    avail = budget - weight_bytes - (4 << 20)
    tn_cap = max(16, avail // max(per_row_bytes, 1))
    tn = max(16, min(1024, (tn_cap // 16) * 16))
    tn = min(tn, _round_up(bs, 16))
    if bs >= 512:
        # Keep >= 2 row tiles so the "parallel" axis shards across v7x's two
        # TensorCores without dropping per-tile DMA size below ~256 rows.
        tn = min(tn, _round_up(-(-bs // 2), 16))
    vmem_limit = int(max(32 << 20, min(budget, 96 << 20)))
    return tn, vmem_limit


def vmt_loss(x1, y1, x2, y2, w1, b1, w2, b2, key, *, shuffle=True, samples=1):
    """JAX wrapper reproducing VMTLoss.forward semantics."""
    assert x1.shape[0] == x2.shape[0]
    bs = x1.shape[0]
    k_perm, k_alpha = jax.random.split(key)

    if shuffle:
        # TODO(synk): permutation gather stays in the wrapper; folding it into
        # the kernel needs scalar-prefetched row indices + manual row DMA.
        idx = jax.random.permutation(k_perm, bs)
        x2 = x2[idx]
        y2 = y2[idx]

    # Flatten NCHW -> [B, D]; keep big streams f32 (cast to bf16 happens
    # in-kernel at the MXU input, so no extra HBM convert pass).
    x1f = x1.reshape(bs, -1).astype(jnp.float32)
    x2f = x2.reshape(bs, -1).astype(jnp.float32)
    y1 = jnp.asarray(y1, jnp.float32)
    y2 = jnp.asarray(y2, jnp.float32)
    d = x1f.shape[1]
    k_cls = y1.shape[1]

    # Zero-pad hidden dim to a multiple of 128 lanes (exact: ReLU(0)=0 and
    # padded w2 rows are zero). Weights are small one-time reads.
    w1 = jnp.asarray(w1, jnp.float32)
    b1 = jnp.asarray(b1, jnp.float32).reshape(1, -1)
    w2 = jnp.asarray(w2, jnp.float32)
    b2 = jnp.asarray(b2, jnp.float32).reshape(1, -1)
    hid = w1.shape[1]
    hid_pad = _round_up(hid, 128)
    if hid_pad != hid:
        w1 = jnp.pad(w1, ((0, 0), (0, hid_pad - hid)))
        b1 = jnp.pad(b1, ((0, 0), (0, hid_pad - hid)))
        w2 = jnp.pad(w2, ((0, hid_pad - hid), (0, 0)))
    w1 = w1.astype(jnp.bfloat16)               # bf16 MXU operand, f32 accumulation

    tn, vmem_limit = _choose_tiling(bs, d, k_cls, hid_pad, samples)
    n_tiles = -(-bs // tn)
    masked = (bs % tn) != 0                    # ragged last tile -> in-kernel mask

    # One alpha per (sample, row), Uniform(0,1) like torch.rand.
    alphas = jax.random.uniform(k_alpha, (samples, bs, 1), dtype=jnp.float32)

    kernel = functools.partial(vmt_loss_kernel, n_valid=bs, tn=tn,
                               samples=samples, masked=masked)

    single = pl.Buffered(buffer_count=1)       # resident weights: no double buffer
    partials = pl.pallas_call(
        kernel,
        out_shape=jax.ShapeDtypeStruct((n_tiles, 8, 128), jnp.float32),
        grid=(n_tiles,),
        in_specs=[
            pl.BlockSpec((tn, d), lambda i: (i, 0)),                   # x1
            pl.BlockSpec((tn, d), lambda i: (i, 0)),                   # x2
            pl.BlockSpec((tn, k_cls), lambda i: (i, 0)),               # y1
            pl.BlockSpec((tn, k_cls), lambda i: (i, 0)),               # y2
            pl.BlockSpec((samples, tn, 1), lambda i: (0, i, 0)),       # alpha
            pl.BlockSpec((d, hid_pad), lambda i: (0, 0),
                         pipeline_mode=single),                        # w1 (resident)
            pl.BlockSpec((1, hid_pad), lambda i: (0, 0),
                         pipeline_mode=single),                        # b1 (resident)
            pl.BlockSpec((hid_pad, k_cls), lambda i: (0, 0),
                         pipeline_mode=single),                        # w2 (resident)
            pl.BlockSpec((1, k_cls), lambda i: (0, 0),
                         pipeline_mode=single),                        # b2 (resident)
        ],
        out_specs=pl.BlockSpec((1, 8, 128), lambda i: (i, 0, 0)),
        compiler_params=pltpu.CompilerParams(
            dimension_semantics=("parallel",),
            vmem_limit_bytes=vmem_limit,
        ),
    )(x1f, x2f, y1, y2, alphas, w1, b1, w2, b2)

    # Every element of a tile's (8,128) block holds that tile's summed KL.
    total = jnp.sum(partials[:, 0, 0])
    return total / (samples * bs)              # mean over the TRUE sample count


if __name__ == "__main__":
    key = jax.random.PRNGKey(0)
    kx1, ky1, kw1, kw2, kfwd = jax.random.split(key, 5)

    # Small shapes consistent with the module's forward.
    B, C, H, W = 2, 4, 16, 16
    K_CLS, HID = 8, 32
    D = C * H * W

    x1 = jax.random.normal(kx1, (B, C, H, W), jnp.float32)
    y1 = jax.random.normal(ky1, (B, K_CLS), jnp.float32)
    # x2_getter/y2_getter == None path: reuse x1, y1.
    x2, y2 = x1, y1

    # Deterministic synthetic "net" parameters (2-layer MLP: D -> HID -> K).
    w1 = jax.random.normal(kw1, (D, HID), jnp.float32) * (1.0 / jnp.sqrt(D))
    b1 = jnp.zeros((HID,), jnp.float32)
    w2 = jax.random.normal(kw2, (HID, K_CLS), jnp.float32) * (1.0 / jnp.sqrt(HID))
    b2 = jnp.zeros((K_CLS,), jnp.float32)

    loss = vmt_loss(x1, y1, x2, y2, w1, b1, w2, b2, kfwd,
                    shuffle=True, samples=2)
    loss = jax.block_until_ready(loss)
    assert loss.shape == () and bool(jnp.isfinite(loss))
    print("KERNEL_OK")
</pallas_src>

<mosaic_0001>
module attributes {stable_mosaic.version = 11 : i64} {
  func.func @vmt_loss_kernel(%arg0: i32, %arg1: memref<16x1024xf32, #tpu.memory_space<vmem>>, %arg2: memref<16x1024xf32, #tpu.memory_space<vmem>>, %arg3: memref<16x8xf32, #tpu.memory_space<vmem>>, %arg4: memref<16x8xf32, #tpu.memory_space<vmem>>, %arg5: memref<2x16x1xf32, #tpu.memory_space<vmem>>, %arg6: memref<1024x128xbf16, #tpu.memory_space<vmem>>, %arg7: memref<1x128xf32, #tpu.memory_space<vmem>>, %arg8: memref<128x8xf32, #tpu.memory_space<vmem>>, %arg9: memref<1x8xf32, #tpu.memory_space<vmem>>, %arg10: memref<1x8x128xf32, #tpu.memory_space<vmem>>) attributes {dimension_semantics = [#tpu.dimension_semantics<parallel>], iteration_bounds = array<i64: 1>, scalar_prefetch = 0 : i64, scratch_operands = 0 : i64, tpu.core_type = #tpu.core_type<tc>, window_params = [{transform_indices = @transform_0, window_bounds = array<i64: 16, 1024>}, {transform_indices = @transform_1, window_bounds = array<i64: 16, 1024>}, {transform_indices = @transform_2, window_bounds = array<i64: 16, 8>}, {transform_indices = @transform_3, window_bounds = array<i64: 16, 8>}, {transform_indices = @transform_4, window_bounds = array<i64: 2, 16, 1>}, {pipeline_mode = #tpu.pipeline_mode<synchronous>, transform_indices = @transform_5, window_bounds = array<i64: 1024, 128>}, {pipeline_mode = #tpu.pipeline_mode<synchronous>, transform_indices = @transform_6, window_bounds = array<i64: 1, 128>}, {pipeline_mode = #tpu.pipeline_mode<synchronous>, transform_indices = @transform_7, window_bounds = array<i64: 128, 8>}, {pipeline_mode = #tpu.pipeline_mode<synchronous>, transform_indices = @transform_8, window_bounds = array<i64: 1, 8>}, {transform_indices = @transform_9, window_bounds = array<i64: 1, 8, 128>}]} {
    %c0 = arith.constant 0 : index
    %c0_0 = arith.constant 0 : index
    %0 = vector.load %arg1[%c0, %c0_0] : memref<16x1024xf32, #tpu.memory_space<vmem>>, vector<16x1024xf32>
    %c0_1 = arith.constant 0 : index
    %c0_2 = arith.constant 0 : index
    %1 = vector.load %arg2[%c0_1, %c0_2] : memref<16x1024xf32, #tpu.memory_space<vmem>>, vector<16x1024xf32>
    %2 = arith.subf %0, %1 : vector<16x1024xf32>
    %c0_3 = arith.constant 0 : index
    %c0_4 = arith.constant 0 : index
    %3 = vector.load %arg3[%c0_3, %c0_4] : memref<16x8xf32, #tpu.memory_space<vmem>>, vector<16x8xf32>
    %c0_5 = arith.constant 0 : index
    %c0_6 = arith.constant 0 : index
    %4 = vector.load %arg4[%c0_5, %c0_6] : memref<16x8xf32, #tpu.memory_space<vmem>>, vector<16x8xf32>
    %5 = arith.subf %3, %4 : vector<16x8xf32>
    %c0_7 = arith.constant 0 : index
    %c0_8 = arith.constant 0 : index
    %6 = vector.load %arg6[%c0_7, %c0_8] : memref<1024x128xbf16, #tpu.memory_space<vmem>>, vector<1024x128xbf16>
    %c0_9 = arith.constant 0 : index
    %c0_10 = arith.constant 0 : index
    %7 = vector.load %arg7[%c0_9, %c0_10] : memref<1x128xf32, #tpu.memory_space<vmem>>, vector<1x128xf32>
    %c0_11 = arith.constant 0 : index
    %c0_12 = arith.constant 0 : index
    %8 = vector.load %arg8[%c0_11, %c0_12] : memref<128x8xf32, #tpu.memory_space<vmem>>, vector<128x8xf32>
    %c0_13 = arith.constant 0 : index
    %c0_14 = arith.constant 0 : index
    %9 = vector.load %arg9[%c0_13, %c0_14] : memref<1x8xf32, #tpu.memory_space<vmem>>, vector<1x8xf32>
    %cst = arith.constant 0.000000e+00 : f32
    %10 = vector.broadcast %cst : f32 to vector<16x1xf32>
    %c0_i32 = arith.constant 0 : i32
    %11 = arith.index_cast %c0_i32 : i32 to index
    %c0_15 = arith.constant 0 : index
    %c0_16 = arith.constant 0 : index
    %12 = vector.load %arg5[%11, %c0_15, %c0_16] : memref<2x16x1xf32, #tpu.memory_space<vmem>>, vector<1x16x1xf32>
    %13 = vector.shape_cast %12 : vector<1x16x1xf32> to vector<16x1xf32>
    %14 = vector.broadcast %13 : vector<16x1xf32> to vector<16x1024xf32>
    %15 = arith.mulf %14, %2 : vector<16x1024xf32>
    %16 = arith.addf %1, %15 : vector<16x1024xf32>
    %17 = arith.truncf %16 : vector<16x1024xf32> to vector<16x1024xbf16>
    %18 = vector.broadcast %13 : vector<16x1xf32> to vector<16x8xf32>
    %19 = arith.mulf %18, %5 : vector<16x8xf32>
    %20 = arith.addf %4, %19 : vector<16x8xf32>
    %cst_17 = arith.constant dense<0.000000e+00> : vector<16x128xf32>
    %21 = tpu.matmul %17, %6, %cst_17 {dimension_numbers = #tpu.dot_dimension_numbers<[1], [0], [0], [1], [0, 0, 1, 1], [], []>} : vector<16x1024xbf16>, vector<1024x128xbf16>, vector<16x128xf32> -> vector<16x128xf32>
    %22 = vector.broadcast %7 : vector<1x128xf32> to vector<16x128xf32>
    %23 = arith.addf %21, %22 : vector<16x128xf32>
    %cst_18 = arith.constant 0.000000e+00 : f32
    %24 = vector.broadcast %cst_18 : f32 to vector<16x128xf32>
    %25 = arith.maximumf %23, %24 : vector<16x128xf32>
    %cst_19 = arith.constant dense<0.000000e+00> : vector<16x8xf32>
    %26 = tpu.matmul %25, %8, %cst_19 {dimension_numbers = #tpu.dot_dimension_numbers<[1], [0], [0], [1], [0, 0, 1, 1], [], []>} : vector<16x128xf32>, vector<128x8xf32>, vector<16x8xf32> -> vector<16x8xf32>
    %27 = vector.broadcast %9 : vector<1x8xf32> to vector<16x8xf32>
    %28 = arith.addf %26, %27 : vector<16x8xf32>
    %cst_20 = arith.constant dense<0xFF800000> : vector<16xf32>
    %29 = vector.multi_reduction <maximumf>, %20, %cst_20 [1] : vector<16x8xf32> to vector<16xf32>
    %30 = vector.shape_cast %29 : vector<16xf32> to vector<16x1xf32>
    %31 = vector.broadcast %30 : vector<16x1xf32> to vector<16x8xf32>
    %32 = arith.subf %20, %31 : vector<16x8xf32>
    %33 = math.exp %32 : vector<16x8xf32>
    %cst_21 = arith.constant dense<0.000000e+00> : vector<16xf32>
    %34 = vector.multi_reduction <add>, %33, %cst_21 [1] : vector<16x8xf32> to vector<16xf32>
    %35 = vector.shape_cast %34 : vector<16xf32> to vector<16x1xf32>
    %36 = math.log %35 : vector<16x1xf32>
    %37 = vector.broadcast %36 : vector<16x1xf32> to vector<16x8xf32>
    %38 = arith.subf %32, %37 : vector<16x8xf32>
    %cst_22 = arith.constant dense<0xFF800000> : vector<16xf32>
    %39 = vector.multi_reduction <maximumf>, %28, %cst_22 [1] : vector<16x8xf32> to vector<16xf32>
    %40 = vector.shape_cast %39 : vector<16xf32> to vector<16x1xf32>
    %41 = vector.broadcast %40 : vector<16x1xf32> to vector<16x8xf32>
    %42 = arith.subf %28, %41 : vector<16x8xf32>
    %43 = math.exp %42 : vector<16x8xf32>
    %cst_23 = arith.constant dense<0.000000e+00> : vector<16xf32>
    %44 = vector.multi_reduction <add>, %43, %cst_23 [1] : vector<16x8xf32> to vector<16xf32>
    %45 = vector.shape_cast %44 : vector<16xf32> to vector<16x1xf32>
    %46 = math.log %45 : vector<16x1xf32>
    %47 = vector.broadcast %46 : vector<16x1xf32> to vector<16x8xf32>
    %48 = arith.subf %42, %47 : vector<16x8xf32>
    %49 = math.exp %38 : vector<16x8xf32>
    %50 = arith.subf %38, %48 : vector<16x8xf32>
    %51 = arith.mulf %49, %50 : vector<16x8xf32>
    %cst_24 = arith.constant dense<0.000000e+00> : vector<16xf32>
    %52 = vector.multi_reduction <add>, %51, %cst_24 [1] : vector<16x8xf32> to vector<16xf32>
    %53 = vector.shape_cast %52 : vector<16xf32> to vector<16x1xf32>
    %54 = arith.addf %10, %53 : vector<16x1xf32>
    %c1_i32 = arith.constant 1 : i32
    %55 = arith.index_cast %c1_i32 : i32 to index
    %c0_25 = arith.constant 0 : index
    %c0_26 = arith.constant 0 : index
    %56 = vector.load %arg5[%55, %c0_25, %c0_26] : memref<2x16x1xf32, #tpu.memory_space<vmem>>, vector<1x16x1xf32>
    %57 = vector.shape_cast %56 : vector<1x16x1xf32> to vector<16x1xf32>
    %58 = vector.broadcast %57 : vector<16x1xf32> to vector<16x1024xf32>
    %59 = arith.mulf %58, %2 : vector<16x1024xf32>
    %60 = arith.addf %1, %59 : vector<16x1024xf32>
    %61 = arith.truncf %60 : vector<16x1024xf32> to vector<16x1024xbf16>
    %62 = vector.broadcast %57 : vector<16x1xf32> to vector<16x8xf32>
    %63 = arith.mulf %62, %5 : vector<16x8xf32>
    %64 = arith.addf %4, %63 : vector<16x8xf32>
    %cst_27 = arith.constant dense<0.000000e+00> : vector<16x128xf32>
    %65 = tpu.matmul %61, %6, %cst_27 {dimension_numbers = #tpu.dot_dimension_numbers<[1], [0], [0], [1], [0, 0, 1, 1], [], []>} : vector<16x1024xbf16>, vector<1024x128xbf16>, vector<16x128xf32> -> vector<16x128xf32>
    %66 = vector.broadcast %7 : vector<1x128xf32> to vector<16x128xf32>
    %67 = arith.addf %65, %66 : vector<16x128xf32>
    %cst_28 = arith.constant 0.000000e+00 : f32
    %68 = vector.broadcast %cst_28 : f32 to vector<16x128xf32>
    %69 = arith.maximumf %67, %68 : vector<16x128xf32>
    %cst_29 = arith.constant dense<0.000000e+00> : vector<16x8xf32>
    %70 = tpu.matmul %69, %8, %cst_29 {dimension_numbers = #tpu.dot_dimension_numbers<[1], [0], [0], [1], [0, 0, 1, 1], [], []>} : vector<16x128xf32>, vector<128x8xf32>, vector<16x8xf32> -> vector<16x8xf32>
    %71 = vector.broadcast %9 : vector<1x8xf32> to vector<16x8xf32>
    %72 = arith.addf %70, %71 : vector<16x8xf32>
    %cst_30 = arith.constant dense<0xFF800000> : vector<16xf32>
    %73 = vector.multi_reduction <maximumf>, %64, %cst_30 [1] : vector<16x8xf32> to vector<16xf32>
    %74 = vector.shape_cast %73 : vector<16xf32> to vector<16x1xf32>
    %75 = vector.broadcast %74 : vector<16x1xf32> to vector<16x8xf32>
    %76 = arith.subf %64, %75 : vector<16x8xf32>
    %77 = math.exp %76 : vector<16x8xf32>
    %cst_31 = arith.constant dense<0.000000e+00> : vector<16xf32>
    %78 = vector.multi_reduction <add>, %77, %cst_31 [1] : vector<16x8xf32> to vector<16xf32>
    %79 = vector.shape_cast %78 : vector<16xf32> to vector<16x1xf32>
    %80 = math.log %79 : vector<16x1xf32>
    %81 = vector.broadcast %80 : vector<16x1xf32> to vector<16x8xf32>
    %82 = arith.subf %76, %81 : vector<16x8xf32>
    %cst_32 = arith.constant dense<0xFF800000> : vector<16xf32>
    %83 = vector.multi_reduction <maximumf>, %72, %cst_32 [1] : vector<16x8xf32> to vector<16xf32>
    %84 = vector.shape_cast %83 : vector<16xf32> to vector<16x1xf32>
    %85 = vector.broadcast %84 : vector<16x1xf32> to vector<16x8xf32>
    %86 = arith.subf %72, %85 : vector<16x8xf32>
    %87 = math.exp %86 : vector<16x8xf32>
    %cst_33 = arith.constant dense<0.000000e+00> : vector<16xf32>
    %88 = vector.multi_reduction <add>, %87, %cst_33 [1] : vector<16x8xf32> to vector<16xf32>
    %89 = vector.shape_cast %88 : vector<16xf32> to vector<16x1xf32>
    %90 = math.log %89 : vector<16x1xf32>
    %91 = vector.broadcast %90 : vector<16x1xf32> to vector<16x8xf32>
    %92 = arith.subf %86, %91 : vector<16x8xf32>
    %93 = math.exp %82 : vector<16x8xf32>
    %94 = arith.subf %82, %92 : vector<16x8xf32>
    %95 = arith.mulf %93, %94 : vector<16x8xf32>
    %cst_34 = arith.constant dense<0.000000e+00> : vector<16xf32>
    %96 = vector.multi_reduction <add>, %95, %cst_34 [1] : vector<16x8xf32> to vector<16xf32>
    %97 = vector.shape_cast %96 : vector<16xf32> to vector<16x1xf32>
    %98 = arith.addf %54, %97 : vector<16x1xf32>
    %c2_i32 = arith.constant 2 : i32
    %99 = tpu.iota {dimensions = array<i32: 0>} : vector<16x1xi32>
    %c16_i32 = arith.constant 16 : i32
    %100 = arith.muli %arg0, %c16_i32 : i32
    %101 = vector.broadcast %100 : i32 to vector<16x1xi32>
    %102 = arith.addi %99, %101 : vector<16x1xi32>
    %c2_i32_35 = arith.constant 2 : i32
    %103 = vector.broadcast %c2_i32_35 : i32 to vector<16x1xi32>
    %104 = arith.cmpi slt, %102, %103 : vector<16x1xi32>
    %cst_36 = arith.constant 0.000000e+00 : f32
    %105 = vector.broadcast %cst_36 : f32 to vector<16x1xf32>
    %106 = arith.select %104, %98, %105 : vector<16x1xi1>, vector<16x1xf32>
    %107 = vector.shape_cast %106 : vector<16x1xf32> to vector<1x16x1xf32>
    %cst_37 = arith.constant dense<0.000000e+00> : vector<1xf32>
    %108 = vector.multi_reduction <add>, %107, %cst_37 [1, 2] : vector<1x16x1xf32> to vector<1xf32>
    %109 = vector.shape_cast %108 : vector<1xf32> to vector<1x1x1xf32>
    %110 = vector.extract %109[0, 0, 0] : f32 from vector<1x1x1xf32>
    %111 = vector.broadcast %110 : f32 to vector<1x8x128xf32>
    %c0_38 = arith.constant 0 : index
    %c0_39 = arith.constant 0 : index
    %c0_40 = arith.constant 0 : index
    %112 = vector.load %arg10[%c0_38, %c0_39, %c0_40] : memref<1x8x128xf32, #tpu.memory_space<vmem>>, vector<1x8x128xf32>
    tpu.vector_store %arg10[%c0_38, %c0_39, %c0_40], %111 {strides = array<i32>} : memref<1x8x128xf32, #tpu.memory_space<vmem>>, vector<1x8x128xf32>,
    return
  }
  func.func @transform_0(%arg0: i32) -> (i32, i32) {
    %c0_i32 = arith.constant 0 : i32
    %c0_i32_0 = arith.constant 0 : i32
    return %arg0, %c0_i32 : i32, i32
  }
  func.func @transform_1(%arg0: i32) -> (i32, i32) {
    %c0_i32 = arith.constant 0 : i32
    %c0_i32_0 = arith.constant 0 : i32
    return %arg0, %c0_i32 : i32, i32
  }
  func.func @transform_2(%arg0: i32) -> (i32, i32) {
    %c0_i32 = arith.constant 0 : i32
    %c0_i32_0 = arith.constant 0 : i32
    return %arg0, %c0_i32 : i32, i32
  }
  func.func @transform_3(%arg0: i32) -> (i32, i32) {
    %c0_i32 = arith.constant 0 : i32
    %c0_i32_0 = arith.constant 0 : i32
    return %arg0, %c0_i32 : i32, i32
  }
  func.func @transform_4(%arg0: i32) -> (i32, i32, i32) {
    %c0_i32 = arith.constant 0 : i32
    %c0_i32_0 = arith.constant 0 : i32
    %c0_i32_1 = arith.constant 0 : i32
    return %c0_i32, %arg0, %c0_i32_0 : i32, i32, i32
  }
  func.func @transform_5(%arg0: i32) -> (i32, i32) {
    %c0_i32 = arith.constant 0 : i32
    %c0_i32_0 = arith.constant 0 : i32
    %c0_i32_1 = arith.constant 0 : i32
    return %c0_i32, %c0_i32_0 : i32, i32
  }
  func.func @transform_6(%arg0: i32) -> (i32, i32) {
    %c0_i32 = arith.constant 0 : i32
    %c0_i32_0 = arith.constant 0 : i32
    %c0_i32_1 = arith.constant 0 : i32
    return %c0_i32, %c0_i32_0 : i32, i32
  }
  func.func @transform_7(%arg0: i32) -> (i32, i32) {
    %c0_i32 = arith.constant 0 : i32
    %c0_i32_0 = arith.constant 0 : i32
    %c0_i32_1 = arith.constant 0 : i32
    return %c0_i32, %c0_i32_0 : i32, i32
  }
  func.func @transform_8(%arg0: i32) -> (i32, i32) {
    %c0_i32 = arith.constant 0 : i32
    %c0_i32_0 = arith.constant 0 : i32
    %c0_i32_1 = arith.constant 0 : i32
    return %c0_i32, %c0_i32_0 : i32, i32
  }
  func.func @transform_9(%arg0: i32) -> (i32, i32, i32) {
    %c0_i32 = arith.constant 0 : i32
    %c0_i32_0 = arith.constant 0 : i32
    %c0_i32_1 = arith.constant 0 : i32
    return %arg0, %c0_i32, %c0_i32_0 : i32, i32, i32
  }
}

</mosaic_0001>

<llo_original>
// kernel: tpu_custom_call.1
$region0: #{tpu_custom_call.1}
  #allocation0 [shape = 'u32[]', space=smem, size = 0x4, offset = 0x4, fixed_abs, tag = 'smem constant byte address 0x4 - core index']
  #allocation1 [shape = 'u32[144,128]{1,0:T(1,128)}', space=vmem, size = 0x12000, scoped, tag = 'internal scratch']
  %s0 = inlined_call_operand.vmem [shape: f32[2,1024], index: 0, kind: input, shape index: {}]
  %s1 = inlined_call_operand.vmem [shape: f32[2,1024], index: 1, kind: input, shape index: {}]
  %s2 = inlined_call_operand.vmem [shape: f32[2,8], index: 2, kind: input, shape index: {}]
  %s3 = inlined_call_operand.vmem [shape: f32[2,8], index: 3, kind: input, shape index: {}]
  %s4 = inlined_call_operand.vmem [shape: f32[2,2,1], index: 4, kind: input, shape index: {}]
  %s5 = inlined_call_operand.hbm [shape: bf16[1024,128], index: 5, kind: input, shape index: {}]
  %s6 = inlined_call_operand.vmem [shape: f32[1,128], index: 6, kind: input, shape index: {}]
  %s7 = inlined_call_operand.vmem [shape: f32[128,8], index: 7, kind: input, shape index: {}]
  %s8 = inlined_call_operand.vmem [shape: f32[1,8], index: 8, kind: input, shape index: {}]
  %s9 = inlined_call_operand.hbm [shape: f32[1,8,128], index: 9, kind: output, shape index: {}]
  %s10 = sld [smem:[#allocation0]]
  $region84: #{tpu_custom_call.1} parent=0
    _
  %s12 = ssub.s32 1, %s10
  %s13 = scalar_select 0, %s12, %s10
  $region1: #{tpu_custom_call.1} parent=0
    #allocation2 [shape = 'u8[16384]{0}', space=vmem, size = 0x4000, scoped, tag = 'input window, operand 4, single buffered']
    #allocation3 [shape = 'u8[262144]{0}', space=vmem, size = 0x40000, scoped, tag = 'input window, operand 5, single buffered']
    #allocation4 [shape = 's32[1]{0}', space=sflag, size = 0x4, scoped, tag = 'scoped memory for tpu_custom_call.1']
    #allocation5 [shape = 's32[1]{0}', space=sflag, size = 0x4, scoped, tag = 'scoped memory for tpu_custom_call.1']
    #allocation6 [shape = 'u8[4096]{0}', space=vmem, size = 0x1000, scoped, tag = 'output window, operand 0, single buffered']
    %14 = vsyncpa [#allocation4], 0
    %15 = vsyncpa [#allocation5], 0
    // Predicated region
    $region2: #{tpu_custom_call.1} parent=1 // pred_check
      _
    $region3: #{tpu_custom_call.1} parent=1 // pred_check_branch
      %17 = sbr.rel (0) target = $region5
    $region4: #{tpu_custom_call.1} parent=1 // pred_region
      _
    $region5: #{tpu_custom_call.1} parent=1 // pred_fallthru
      _
    // Predicated region
    $region6: #{tpu_custom_call.1} parent=1 // pred_check
      _
    $region7: #{tpu_custom_call.1} parent=1 // pred_check_branch
      %19 = sbr.rel (0) target = $region9
    $region8: #{tpu_custom_call.1} parent=1 // pred_region
      _
    $region9: #{tpu_custom_call.1} parent=1 // pred_fallthru
      _
    // Predicated region
    $region10: #{tpu_custom_call.1} parent=1 // pred_check
      _
    $region11: #{tpu_custom_call.1} parent=1 // pred_check_branch
      %21 = sbr.rel (0) target = $region13
    $region12: #{tpu_custom_call.1} parent=1 // pred_region
      _
    $region13: #{tpu_custom_call.1} parent=1 // pred_fallthru
      _
    // Predicated region
    $region14: #{tpu_custom_call.1} parent=1 // pred_check
      _
    $region15: #{tpu_custom_call.1} parent=1 // pred_check_branch
      %23 = sbr.rel (0) target = $region17
    $region16: #{tpu_custom_call.1} parent=1 // pred_region
      _
    $region17: #{tpu_custom_call.1} parent=1 // pred_fallthru
      _
    // Predicated region
    $region18: #{tpu_custom_call.1} parent=1 // pred_check
      _
    $region19: #{tpu_custom_call.1} parent=1 // pred_check_branch
      %25 = sbr.rel (0) target = $region21
    $region20: #{tpu_custom_call.1} parent=1 // pred_region
      // Predicated region
      $region22: #{tpu_custom_call.1} parent=20 // pred_check
        _
      $region23: #{tpu_custom_call.1} parent=20 // pred_check_branch
        %27 = sbr.rel (0) target = $region25
      $region24: #{tpu_custom_call.1} parent=20 // pred_region
        // Predicated region
        $region26: #{tpu_custom_call.1} parent=24 // pred_check
          _
        $region27: #{tpu_custom_call.1} parent=24 // pred_check_branch
          %29 = sbr.rel target = $region29
        $region28: #{tpu_custom_call.1} parent=24 // pred_region
          // Predicated region
          $region41: #{tpu_custom_call.1} parent=28 // pred_check
            _
          $region42: #{tpu_custom_call.1} parent=28 // pred_check_branch
            %46 = sbr.rel (0) target = $region44
          $region43: #{tpu_custom_call.1} parent=28 // pred_region
            loop: start=0, step=1, limit=1
            $region45: #{tpu_custom_call.1} parent=43 // loop_pre_header
              _
            $region46: #{tpu_custom_call.1} parent=43 // loop_header
              %s49 = sphi 0, %s53
              %p50 = scmp.ge.s32.totalorder %s49, 1
              %s54 = sphi %s4, %s4
              %s55 = sphi [#allocation2], [#allocation2]
            $region47: #{tpu_custom_call.1} parent=43 // loop_header_branch
              %52 = sbr.rel (%p50) target = $region51
            $region48: #{tpu_custom_call.1} parent=43 // loop_body
              %v56 = vld [vmem:[%s54] sm:$0x3]
              %57 = vst [vmem:[%s55] sm:$0x3] %v56
              %v58 = vld [vmem:[%s54 + $0x2] sm:$0x3]
              %59 = vst [vmem:[%s55 + $0x10] sm:$0x3] %v58
            $region49: #{tpu_custom_call.1} parent=43 // loop_footer
              %s53 = sadd.s32 1, %s49
            $region50: #{tpu_custom_call.1} parent=43 // loop_footer_branch
              %48 = sbr.rel target = $region46
            $region51: #{tpu_custom_call.1} parent=43 // loop_exit
              _
          $region44: #{tpu_custom_call.1} parent=28 // pred_fallthru
            _
        $region29: #{tpu_custom_call.1} parent=24 // pred_fallthru
          _
        // Predicated region
        $region30: #{tpu_custom_call.1} parent=24 // pred_check
          _
        $region31: #{tpu_custom_call.1} parent=24 // pred_check_branch
          %31 = sbr.rel (0) target = $region33
        $region32: #{tpu_custom_call.1} parent=24 // pred_region
          loop: start=0, step=1, limit=1
          $region34: #{tpu_custom_call.1} parent=32 // loop_pre_header
            _
          $region35: #{tpu_custom_call.1} parent=32 // loop_header
            %s34 = sphi 0, %s38
            %p35 = scmp.ge.s32.totalorder %s34, 1
            %s39 = sphi %s4, %s4
            %s40 = sphi [#allocation2], [#allocation2]
          $region36: #{tpu_custom_call.1} parent=32 // loop_header_branch
            %37 = sbr.rel (%p35) target = $region40
          $region37: #{tpu_custom_call.1} parent=32 // loop_body
            %v41 = vld [vmem:[%s39] sm:$0x3]
            %42 = vst [vmem:[%s40] sm:$0x3] %v41
            %v43 = vld [vmem:[%s39 + $0x2] sm:$0x3]
            %44 = vst [vmem:[%s40 + $0x10] sm:$0x3] %v43
          $region38: #{tpu_custom_call.1} parent=32 // loop_footer
            %s38 = sadd.s32 1, %s34
          $region39: #{tpu_custom_call.1} parent=32 // loop_footer_branch
            %33 = sbr.rel target = $region35
          $region40: #{tpu_custom_call.1} parent=32 // loop_exit
            _
        $region33: #{tpu_custom_call.1} parent=24 // pred_fallthru
          _
      $region25: #{tpu_custom_call.1} parent=20 // pred_fallthru
        _
      %60 = vnop
    $region21: #{tpu_custom_call.1} parent=1 // pred_fallthru
      _
    // Predicated region
    $region52: #{tpu_custom_call.1} parent=1 // pred_check
      _
    $region53: #{tpu_custom_call.1} parent=1 // pred_check_branch
      %62 = sbr.rel (0) target = $region55
    $region54: #{tpu_custom_call.1} parent=1 // pred_region
      %s64 = ssub.s32 8192, 8192
      %65 = vsyncadd [#allocation4], %s64
      %s66 = sshll.u32 [#allocation3], 4
      %s67 = int_to_ptr.vmem [resolvable:$true] %s66
      %72 = dma.hbm_to_vmem [thread:$0]  %s5, 8192, %s67, [#allocation4], 64, 64, 4
    $region55: #{tpu_custom_call.1} parent=1 // pred_fallthru
      _
    // Predicated region
    $region56: #{tpu_custom_call.1} parent=1 // pred_check
      _
    $region57: #{tpu_custom_call.1} parent=1 // pred_check_branch
      %74 = sbr.rel (0) target = $region59
    $region58: #{tpu_custom_call.1} parent=1 // pred_region
      _
    $region59: #{tpu_custom_call.1} parent=1 // pred_fallthru
      _
    // Predicated region
    $region60: #{tpu_custom_call.1} parent=1 // pred_check
      _
    $region61: #{tpu_custom_call.1} parent=1 // pred_check_branch
      %76 = sbr.rel (0) target = $region63
    $region62: #{tpu_custom_call.1} parent=1 // pred_region
      _
    $region63: #{tpu_custom_call.1} parent=1 // pred_fallthru
      _
    // Predicated region
    $region64: #{tpu_custom_call.1} parent=1 // pred_check
      _
    $region65: #{tpu_custom_call.1} parent=1 // pred_check_branch
      %78 = sbr.rel (0) target = $region67
    $region66: #{tpu_custom_call.1} parent=1 // pred_region
      _
    $region67: #{tpu_custom_call.1} parent=1 // pred_fallthru
      _
    // Predicated region
    $region68: #{tpu_custom_call.1} parent=1 // pred_check
      _
    $region69: #{tpu_custom_call.1} parent=1 // pred_check_branch
      %80 = sbr.rel (0) target = $region71
    $region70: #{tpu_custom_call.1} parent=1 // pred_region
      _
    $region71: #{tpu_custom_call.1} parent=1 // pred_fallthru
      _
    // Predicated region
    $region72: #{tpu_custom_call.1} parent=1 // pred_check
      _
    $region73: #{tpu_custom_call.1} parent=1 // pred_check_branch
      %82 = sbr.rel (0) target = $region75
    $region74: #{tpu_custom_call.1} parent=1 // pred_region
      %83 = dma.done [#allocation4], 8192
    $region75: #{tpu_custom_call.1} parent=1 // pred_fallthru
      _
    %v85 = vld [vmem:[%s0] sm:$0xff]
    %v86 = vld [vmem:[%s0 + $0x8] sm:$0xff]
    %v87 = vld [vmem:[%s0 + $0x10] sm:$0xff]
    %v88 = vld [vmem:[%s0 + $0x18] sm:$0xff]
    %v89 = vld [vmem:[%s0 + $0x20] sm:$0xff]
    %v90 = vld [vmem:[%s0 + $0x28] sm:$0xff]
    %v91 = vld [vmem:[%s0 + $0x30] sm:$0xff]
    %v92 = vld [vmem:[%s0 + $0x38] sm:$0xff]
    %v93 = vld [vmem:[%s0 + $0x40] sm:$0xff]
    %v94 = vld [vmem:[%s0 + $0x48] sm:$0xff]
    %v95 = vld [vmem:[%s0 + $0x50] sm:$0xff]
    %v96 = vld [vmem:[%s0 + $0x58] sm:$0xff]
    %v97 = vld [vmem:[%s0 + $0x60] sm:$0xff]
    %v98 = vld [vmem:[%s0 + $0x68] sm:$0xff]
    %v99 = vld [vmem:[%s0 + $0x70] sm:$0xff]
    %v100 = vld [vmem:[%s0 + $0x78] sm:$0xff]
    %v101 = vld [vmem:[%s1] sm:$0xff]
    %v102 = vld [vmem:[%s1 + $0x8] sm:$0xff]
    %v103 = vld [vmem:[%s1 + $0x10] sm:$0xff]
    %v104 = vld [vmem:[%s1 + $0x18] sm:$0xff]
    %v105 = vld [vmem:[%s1 + $0x20] sm:$0xff]
    %v106 = vld [vmem:[%s1 + $0x28] sm:$0xff]
    %v107 = vld [vmem:[%s1 + $0x30] sm:$0xff]
    %v108 = vld [vmem:[%s1 + $0x38] sm:$0xff]
    %v109 = vld [vmem:[%s1 + $0x40] sm:$0xff]
    %v110 = vld [vmem:[%s1 + $0x48] sm:$0xff]
    %v111 = vld [vmem:[%s1 + $0x50] sm:$0xff]
    %v112 = vld [vmem:[%s1 + $0x58] sm:$0xff]
    %v113 = vld [vmem:[%s1 + $0x60] sm:$0xff]
    %v114 = vld [vmem:[%s1 + $0x68] sm:$0xff]
    %v115 = vld [vmem:[%s1 + $0x70] sm:$0xff]
    %v116 = vld [vmem:[%s1 + $0x78] sm:$0xff]
    %v117 = vsub.f32 %v85, %v101
    %v118 = vsub.f32 %v86, %v102
    %v119 = vsub.f32 %v87, %v103
    %v120 = vsub.f32 %v88, %v104
    %v121 = vsub.f32 %v89, %v105
    %v122 = vsub.f32 %v90, %v106
    %v123 = vsub.f32 %v91, %v107
    %v124 = vsub.f32 %v92, %v108
    %v125 = vsub.f32 %v93, %v109
    %v126 = vsub.f32 %v94, %v110
    %v127 = vsub.f32 %v95, %v111
    %v128 = vsub.f32 %v96, %v112
    %v129 = vsub.f32 %v97, %v113
    %v130 = vsub.f32 %v98, %v114
    %v131 = vsub.f32 %v99, %v115
    %v132 = vsub.f32 %v100, %v116
    %v133 = vld [vmem:[%s2] sm:$0xff]
    %v134 = vld [vmem:[%s2 + $0x8] sm:$0xff]
    %v135 = vld [vmem:[%s3] sm:$0xff]
    %v136 = vld [vmem:[%s3 + $0x8] sm:$0xff]
    %v137 = vsub.f32 %v133, %v135
    %v138 = vsub.f32 %v134, %v136
    %v139 = vld [vmem:[#allocation3] sm:$0xf]
    %v140 = vld [vmem:[#allocation3 + $0x4] sm:$0xf]
    %v141 = vld [vmem:[#allocation3 + $0x8] sm:$0xf]
    %v142 = vld [vmem:[#allocation3 + $0xc] sm:$0xf]
    %v143 = vld [vmem:[#allocation3 + $0x10] sm:$0xf]
    %v144 = vld [vmem:[#allocation3 + $0x14] sm:$0xf]
    %v145 = vld [vmem:[#allocation3 + $0x18] sm:$0xf]
    %v146 = vld [vmem:[#allocation3 + $0x1c] sm:$0xf]
    %v147 = vld [vmem:[#allocation3 + $0x20] sm:$0xf]
    %v148 = vld [vmem:[#allocation3 + $0x24] sm:$0xf]
    %v149 = vld [vmem:[#allocation3 + $0x28] sm:$0xf]
    %v150 = vld [vmem:[#allocation3 + $0x2c] sm:$0xf]
    %v151 = vld [vmem:[#allocation3 + $0x30] sm:$0xf]
    %v152 = vld [vmem:[#allocation3 + $0x34] sm:$0xf]
    %v153 = vld [vmem:[#allocation3 + $0x38] sm:$0xf]
    %v154 = vld [vmem:[#allocation3 + $0x3c] sm:$0xf]
    %v155 = vld [vmem:[#allocation3 + $0x40] sm:$0xf]
    %v156 = vld [vmem:[#allocation3 + $0x44] sm:$0xf]
    %v157 = vld [vmem:[#allocation3 + $0x48] sm:$0xf]
    %v158 = vld [vmem:[#allocation3 + $0x4c] sm:$0xf]
    %v159 = vld [vmem:[#allocation3 + $0x50] sm:$0xf]
    %v160 = vld [vmem:[#allocation3 + $0x54] sm:$0xf]
    %v161 = vld [vmem:[#allocation3 + $0x58] sm:$0xf]
    %v162 = vld [vmem:[#allocation3 + $0x5c] sm:$0xf]
    %v163 = vld [vmem:[#allocation3 + $0x60] sm:$0xf]
    %v164 = vld [vmem:[#allocation3 + $0x64] sm:$0xf]
    %v165 = vld [vmem:[#allocation3 + $0x68] sm:$0xf]
    %v166 = vld [vmem:[#allocation3 + $0x6c] sm:$0xf]
    %v167 = vld [vmem:[#allocation3 + $0x70] sm:$0xf]
    %v168 = vld [vmem:[#allocation3 + $0x74] sm:$0xf]
    %v169 = vld [vmem:[#allocation3 + $0x78] sm:$0xf]
    %v170 = vld [vmem:[#allocation3 + $0x7c] sm:$0xf]
    %v171 = vld [vmem:[#allocation3 + $0x80] sm:$0xf]
    %v172 = vld [vmem:[#allocation3 + $0x84] sm:$0xf]
    %v173 = vld [vmem:[#allocation3 + $0x88] sm:$0xf]
    %v174 = vld [vmem:[#allocation3 + $0x8c] sm:$0xf]
    %v175 = vld [vmem:[#allocation3 + $0x90] sm:$0xf]
    %v176 = vld [vmem:[#allocation3 + $0x94] sm:$0xf]
    %v177 = vld [vmem:[#allocation3 + $0x98] sm:$0xf]
    %v178 = vld [vmem:[#allocation3 + $0x9c] sm:$0xf]
    %v179 = vld [vmem:[#allocation3 + $0xa0] sm:$0xf]
    %v180 = vld [vmem:[#allocation3 + $0xa4] sm:$0xf]
    %v181 = vld [vmem:[#allocation3 + $0xa8] sm:$0xf]
    %v182 = vld [vmem:[#allocation3 + $0xac] sm:$0xf]
    %v183 = vld [vmem:[#allocation3 + $0xb0] sm:$0xf]
    %v184 = vld [vmem:[#allocation3 + $0xb4] sm:$0xf]
    %v185 = vld [vmem:[#allocation3 + $0xb8] sm:$0xf]
    %v186 = vld [vmem:[#allocation3 + $0xbc] sm:$0xf]
    %v187 = vld [vmem:[#allocation3 + $0xc0] sm:$0xf]
    %v188 = vld [vmem:[#allocation3 + $0xc4] sm:$0xf]
    %v189 = vld [vmem:[#allocation3 + $0xc8] sm:$0xf]
    %v190 = vld [vmem:[#allocation3 + $0xcc] sm:$0xf]
    %v191 = vld [vmem:[#allocation3 + $0xd0] sm:$0xf]
    %v192 = vld [vmem:[#allocation3 + $0xd4] sm:$0xf]
    %v193 = vld [vmem:[#allocation3 + $0xd8] sm:$0xf]
    %v194 = vld [vmem:[#allocation3 + $0xdc] sm:$0xf]
    %v195 = vld [vmem:[#allocation3 + $0xe0] sm:$0xf]
    %v196 = vld [vmem:[#allocation3 + $0xe4] sm:$0xf]
    %v197 = vld [vmem:[#allocation3 + $0xe8] sm:$0xf]
    %v198 = vld [vmem:[#allocation3 + $0xec] sm:$0xf]
    %v199 = vld [vmem:[#allocation3 + $0xf0] sm:$0xf]
    %v200 = vld [vmem:[#allocation3 + $0xf4] sm:$0xf]
    %v201 = vld [vmem:[#allocation3 + $0xf8] sm:$0xf]
    %v202 = vld [vmem:[#allocation3 + $0xfc] sm:$0xf]
    %v203 = vld [vmem:[#allocation3 + $0x100] sm:$0xf]
    %v204 = vld [vmem:[#allocation3 + $0x104] sm:$0xf]
    %v205 = vld [vmem:[#allocation3 + $0x108] sm:$0xf]
    %v206 = vld [vmem:[#allocation3 + $0x10c] sm:$0xf]
    %v207 = vld [vmem:[#allocation3 + $0x110] sm:$0xf]
    %v208 = vld [vmem:[#allocation3 + $0x114] sm:$0xf]
    %v209 = vld [vmem:[#allocation3 + $0x118] sm:$0xf]
    %v210 = vld [vmem:[#allocation3 + $0x11c] sm:$0xf]
    %v211 = vld [vmem:[#allocation3 + $0x120] sm:$0xf]
    %v212 = vld [vmem:[#allocation3 + $0x124] sm:$0xf]
    %v213 = vld [vmem:[#allocation3 + $0x128] sm:$0xf]
    %v214 = vld [vmem:[#allocation3 + $0x12c] sm:$0xf]
    %v215 = vld [vmem:[#allocation3 + $0x130] sm:$0xf]
    %v216 = vld [vmem:[#allocation3 + $0x134] sm:$0xf]
    %v217 = vld [vmem:[#allocation3 + $0x138] sm:$0xf]
    %v218 = vld [vmem:[#allocation3 + $0x13c] sm:$0xf]
    %v219 = vld [vmem:[#allocation3 + $0x140] sm:$0xf]
    %v220 = vld [vmem:[#allocation3 + $0x144] sm:$0xf]
    %v221 = vld [vmem:[#allocation3 + $0x148] sm:$0xf]
    %v222 = vld [vmem:[#allocation3 + $0x14c] sm:$0xf]
    %v223 = vld [vmem:[#allocation3 + $0x150] sm:$0xf]
    %v224 = vld [vmem:[#allocation3 + $0x154] sm:$0xf]
    %v225 = vld [vmem:[#allocation3 + $0x158] sm:$0xf]
    %v226 = vld [vmem:[#allocation3 + $0x15c] sm:$0xf]
    %v227 = vld [vmem:[#allocation3 + $0x160] sm:$0xf]
    %v228 = vld [vmem:[#allocation3 + $0x164] sm:$0xf]
    %v229 = vld [vmem:[#allocation3 + $0x168] sm:$0xf]
    %v230 = vld [vmem:[#allocation3 + $0x16c] sm:$0xf]
    %v231 = vld [vmem:[#allocation3 + $0x170] sm:$0xf]
    %v232 = vld [vmem:[#allocation3 + $0x174] sm:$0xf]
    %v233 = vld [vmem:[#allocation3 + $0x178] sm:$0xf]
    %v234 = vld [vmem:[#allocation3 + $0x17c] sm:$0xf]
    %v235 = vld [vmem:[#allocation3 + $0x180] sm:$0xf]
    %v236 = vld [vmem:[#allocation3 + $0x184] sm:$0xf]
    %v237 = vld [vmem:[#allocation3 + $0x188] sm:$0xf]
    %v238 = vld [vmem:[#allocation3 + $0x18c] sm:$0xf]
    %v239 = vld [vmem:[#allocation3 + $0x190] sm:$0xf]
    %v240 = vld [vmem:[#allocation3 + $0x194] sm:$0xf]
    %v241 = vld [vmem:[#allocation3 + $0x198] sm:$0xf]
    %v242 = vld [vmem:[#allocation3 + $0x19c] sm:$0xf]
    %v243 = vld [vmem:[#allocation3 + $0x1a0] sm:$0xf]
    %v244 = vld [vmem:[#allocation3 + $0x1a4] sm:$0xf]
    %v245 = vld [vmem:[#allocation3 + $0x1a8] sm:$0xf]
    %v246 = vld [vmem:[#allocation3 + $0x1ac] sm:$0xf]
    %v247 = vld [vmem:[#allocation3 + $0x1b0] sm:$0xf]
    %v248 = vld [vmem:[#allocation3 + $0x1b4] sm:$0xf]
    %v249 = vld [vmem:[#allocation3 + $0x1b8] sm:$0xf]
    %v250 = vld [vmem:[#allocation3 + $0x1bc] sm:$0xf]
    %v251 = vld [vmem:[#allocation3 + $0x1c0] sm:$0xf]
    %v252 = vld [vmem:[#allocation3 + $0x1c4] sm:$0xf]
    %v253 = vld [vmem:[#allocation3 + $0x1c8] sm:$0xf]
    %v254 = vld [vmem:[#allocation3 + $0x1cc] sm:$0xf]
    %v255 = vld [vmem:[#allocation3 + $0x1d0] sm:$0xf]
    %v256 = vld [vmem:[#allocation3 + $0x1d4] sm:$0xf]
    %v257 = vld [vmem:[#allocation3 + $0x1d8] sm:$0xf]
    %v258 = vld [vmem:[#allocation3 + $0x1dc] sm:$0xf]
    %v259 = vld [vmem:[#allocation3 + $0x1e0] sm:$0xf]
    %v260 = vld [vmem:[#allocation3 + $0x1e4] sm:$0xf]
    %v261 = vld [vmem:[#allocation3 + $0x1e8] sm:$0xf]
    %v262 = vld [vmem:[#allocation3 + $0x1ec] sm:$0xf]
    %v263 = vld [vmem:[#allocation3 + $0x1f0] sm:$0xf]
    %v264 = vld [vmem:[#allocation3 + $0x1f4] sm:$0xf]
    %v265 = vld [vmem:[#allocation3 + $0x1f8] sm:$0xf]
    %v266 = vld [vmem:[#allocation3 + $0x1fc] sm:$0xf]
    %v267 = vld [vmem:[%s6] sm:$0x1]
    %v268 = vld [vmem:[%s7] sm:$0xff]
    %v269 = vld [vmem:[%s7 + $0x8] sm:$0xff]
    %v270 = vld [vmem:[%s7 + $0x10] sm:$0xff]
    %v271 = vld [vmem:[%s7 + $0x18] sm:$0xff]
    %v272 = vld [vmem:[%s7 + $0x20] sm:$0xff]
    %v273 = vld [vmem:[%s7 + $0x28] sm:$0xff]
    %v274 = vld [vmem:[%s7 + $0x30] sm:$0xff]
    %v275 = vld [vmem:[%s7 + $0x38] sm:$0xff]
    %v276 = vld [vmem:[%s7 + $0x40] sm:$0xff]
    %v277 = vld [vmem:[%s7 + $0x48] sm:$0xff]
    %v278 = vld [vmem:[%s7 + $0x50] sm:$0xff]
    %v279 = vld [vmem:[%s7 + $0x58] sm:$0xff]
    %v280 = vld [vmem:[%s7 + $0x60] sm:$0xff]
    %v281 = vld [vmem:[%s7 + $0x68] sm:$0xff]
    %v282 = vld [vmem:[%s7 + $0x70] sm:$0xff]
    %v283 = vld [vmem:[%s7 + $0x78] sm:$0xff]
    %v284 = vld [vmem:[%s8] sm:$0x1]
    %v285 = vld [vmem:[#allocation2] sm:$0xff]
    %v286 = vld [vmem:[#allocation2 + $0x8] sm:$0xff]
    %288 = vset.pattern.permute.xlu0 0
    %289 = vperm.xlu0 %288, %v285
    %v290 = vpop.permute.xlu0 %289
    %293 = vset.pattern.permute.xlu0 0
    %294 = vperm.xlu0 %293, %v286
    %v295 = vpop.permute.xlu0 %294
    %v313 = vcombine.low %v117, %v119
    %v314 = vcombine.high %v117, %v119
    %v315 = vcombine.low %v121, %v123
    %v316 = vcombine.high %v121, %v123
    %v318 = vunpack.c.l.s4 1983009808
    %v319 = vunpack.c.0.s8 %v318
    %v320 = vlaneseq
    %v321 = vshrl.u32 %v320, 7
    %v322 = vsub.s32 %v319, %v321
    %v323 = vrot.slane %v313, %v322
    %v325 = vunpack.c.l.s4 1983009808
    %v326 = vunpack.c.0.s8 %v325
    %v327 = vlaneseq
    %v328 = vshrl.u32 %v327, 7
    %v329 = vsub.s32 %v326, %v328
    %v330 = vrot.slane %v314, %v329
    %v332 = vunpack.c.l.s4 1983009808
    %v333 = vunpack.c.0.s8 %v332
    %v334 = vlaneseq
    %v335 = vshrl.u32 %v334, 7
    %v336 = vsub.s32 %v333, %v335
    %v337 = vrot.slane %v315, %v336
    %v339 = vunpack.c.l.s4 1983009808
    %v340 = vunpack.c.0.s8 %v339
    %v341 = vlaneseq
    %v342 = vshrl.u32 %v341, 7
    %v343 = vsub.s32 %v340, %v342
    %v344 = vrot.slane %v316, %v343
    %v345 = vcombine.low %v323, %v337
    %v346 = vcombine.high %v323, %v337
    %v347 = vcombine.low %v330, %v344
    %v348 = vcombine.high %v330, %v344
    %v349 = vcombine.low %v118, %v120
    %v350 = vcombine.high %v118, %v120
    %v351 = vcombine.low %v122, %v124
    %v352 = vcombine.high %v122, %v124
    %v354 = vunpack.c.l.s4 1983009808
    %v355 = vunpack.c.0.s8 %v354
    %v356 = vlaneseq
    %v357 = vshrl.u32 %v356, 7
    %v358 = vsub.s32 %v355, %v357
    %v359 = vrot.slane %v349, %v358
    %v361 = vunpack.c.l.s4 1983009808
    %v362 = vunpack.c.0.s8 %v361
    %v363 = vlaneseq
    %v364 = vshrl.u32 %v363, 7
    %v365 = vsub.s32 %v362, %v364
    %v366 = vrot.slane %v350, %v365
    %v368 = vunpack.c.l.s4 1983009808
    %v369 = vunpack.c.0.s8 %v368
    %v370 = vlaneseq
    %v371 = vshrl.u32 %v370, 7
    %v372 = vsub.s32 %v369, %v371
    %v373 = vrot.slane %v351, %v372
    %v375 = vunpack.c.l.s4 1983009808
    %v376 = vunpack.c.0.s8 %v375
    %v377 = vlaneseq
    %v378 = vshrl.u32 %v377, 7
    %v379 = vsub.s32 %v376, %v378
    %v380 = vrot.slane %v352, %v379
    %v381 = vcombine.low %v359, %v373
    %v382 = vcombine.high %v359, %v373
    %v383 = vcombine.low %v366, %v380
    %v384 = vcombine.high %v366, %v380
    %v385 = vcombine.low %v125, %v127
    %v386 = vcombine.high %v125, %v127
    %v387 = vcombine.low %v129, %v131
    %v388 = vcombine.high %v129, %v131
    %v390 = vunpack.c.l.s4 1983009808
    %v391 = vunpack.c.0.s8 %v390
    %v392 = vlaneseq
    %v393 = vshrl.u32 %v392, 7
    %v394 = vsub.s32 %v391, %v393
    %v395 = vrot.slane %v385, %v394
    %v397 = vunpack.c.l.s4 1983009808
    %v398 = vunpack.c.0.s8 %v397
    %v399 = vlaneseq
    %v400 = vshrl.u32 %v399, 7
    %v401 = vsub.s32 %v398, %v400
    %v402 = vrot.slane %v386, %v401
    %v404 = vunpack.c.l.s4 1983009808
    %v405 = vunpack.c.0.s8 %v404
    %v406 = vlaneseq
    %v407 = vshrl.u32 %v406, 7
    %v408 = vsub.s32 %v405, %v407
    %v409 = vrot.slane %v387, %v408
    %v411 = vunpack.c.l.s4 1983009808
    %v412 = vunpack.c.0.s8 %v411
    %v413 = vlaneseq
    %v414 = vshrl.u32 %v413, 7
    %v415 = vsub.s32 %v412, %v414
    %v416 = vrot.slane %v388, %v415
    %v417 = vcombine.low %v395, %v409
    %v418 = vcombine.high %v395, %v409
    %v419 = vcombine.low %v402, %v416
    %v420 = vcombine.high %v402, %v416
    %v421 = vcombine.low %v126, %v128
    %v422 = vcombine.high %v126, %v128
    %v423 = vcombine.low %v130, %v132
    %v424 = vcombine.high %v130, %v132
    %v426 = vunpack.c.l.s4 1983009808
    %v427 = vunpack.c.0.s8 %v426
    %v428 = vlaneseq
    %v429 = vshrl.u32 %v428, 7
    %v430 = vsub.s32 %v427, %v429
    %v431 = vrot.slane %v421, %v430
    %v433 = vunpack.c.l.s4 1983009808
    %v434 = vunpack.c.0.s8 %v433
    %v435 = vlaneseq
    %v436 = vshrl.u32 %v435, 7
    %v437 = vsub.s32 %v434, %v436
    %v438 = vrot.slane %v422, %v437
    %v440 = vunpack.c.l.s4 1983009808
    %v441 = vunpack.c.0.s8 %v440
    %v442 = vlaneseq
    %v443 = vshrl.u32 %v442, 7
    %v444 = vsub.s32 %v441, %v443
    %v445 = vrot.slane %v423, %v444
    %v447 = vunpack.c.l.s4 1983009808
    %v448 = vunpack.c.0.s8 %v447
    %v449 = vlaneseq
    %v450 = vshrl.u32 %v449, 7
    %v451 = vsub.s32 %v448, %v450
    %v452 = vrot.slane %v424, %v451
    %v453 = vcombine.low %v431, %v445
    %v454 = vcombine.high %v431, %v445
    %v455 = vcombine.low %v438, %v452
    %v456 = vcombine.high %v438, %v452
    %v473 = vmul.f32 %v290, %v345
    %v474 = vmul.f32 %v290, %v346
    %v475 = vmul.f32 %v290, %v347
    %v476 = vmul.f32 %v290, %v348
    %v477 = vmul.f32 %v290, %v381
    %v478 = vmul.f32 %v290, %v382
    %v479 = vmul.f32 %v290, %v383
    %v480 = vmul.f32 %v290, %v384
    %v481 = vmul.f32 %v295, %v417
    %v482 = vmul.f32 %v295, %v418
    %v483 = vmul.f32 %v295, %v419
    %v484 = vmul.f32 %v295, %v420
    %v485 = vmul.f32 %v295, %v453
    %v486 = vmul.f32 %v295, %v454
    %v487 = vmul.f32 %v295, %v455
    %v488 = vmul.f32 %v295, %v456
    %v505 = vcombine.low %v473, %v474
    %v506 = vcombine.high %v473, %v474
    %v507 = vcombine.low %v475, %v476
    %v508 = vcombine.high %v475, %v476
    %v510 = vunpack.c.l.s4 1983009808
    %v511 = vunpack.c.0.s8 %v510
    %v512 = vlaneseq
    %v513 = vshrl.u32 %v512, 7
    %v514 = vsub.s32 %v511, %v513
    %v515 = vrot.slane %v505, %v514
    %v517 = vunpack.c.l.s4 1983009808
    %v518 = vunpack.c.0.s8 %v517
    %v519 = vlaneseq
    %v520 = vshrl.u32 %v519, 7
    %v521 = vsub.s32 %v518, %v520
    %v522 = vrot.slane %v506, %v521
    %v524 = vunpack.c.l.s4 1983009808
    %v525 = vunpack.c.0.s8 %v524
    %v526 = vlaneseq
    %v527 = vshrl.u32 %v526, 7
    %v528 = vsub.s32 %v525, %v527
    %v529 = vrot.slane %v507, %v528
    %v531 = vunpack.c.l.s4 1983009808
    %v532 = vunpack.c.0.s8 %v531
    %v533 = vlaneseq
    %v534 = vshrl.u32 %v533, 7
    %v535 = vsub.s32 %v532, %v534
    %v536 = vrot.slane %v508, %v535
    %v537 = vcombine.low %v515, %v529
    %v538 = vcombine.high %v515, %v529
    %v539 = vcombine.low %v522, %v536
    %v540 = vcombine.high %v522, %v536
    %v541 = vcombine.low %v477, %v478
    %v542 = vcombine.high %v477, %v478
    %v543 = vcombine.low %v479, %v480
    %v544 = vcombine.high %v479, %v480
    %v546 = vunpack.c.l.s4 1983009808
    %v547 = vunpack.c.0.s8 %v546
    %v548 = vlaneseq
    %v549 = vshrl.u32 %v548, 7
    %v550 = vsub.s32 %v547, %v549
    %v551 = vrot.slane %v541, %v550
    %v553 = vunpack.c.l.s4 1983009808
    %v554 = vunpack.c.0.s8 %v553
    %v555 = vlaneseq
    %v556 = vshrl.u32 %v555, 7
    %v557 = vsub.s32 %v554, %v556
    %v558 = vrot.slane %v542, %v557
    %v560 = vunpack.c.l.s4 1983009808
    %v561 = vunpack.c.0.s8 %v560
    %v562 = vlaneseq
    %v563 = vshrl.u32 %v562, 7
    %v564 = vsub.s32 %v561, %v563
    %v565 = vrot.slane %v543, %v564
    %v567 = vunpack.c.l.s4 1983009808
    %v568 = vunpack.c.0.s8 %v567
    %v569 = vlaneseq
    %v570 = vshrl.u32 %v569, 7
    %v571 = vsub.s32 %v568, %v570
    %v572 = vrot.slane %v544, %v571
    %v573 = vcombine.low %v551, %v565
    %v574 = vcombine.high %v551, %v565
    %v575 = vcombine.low %v558, %v572
    %v576 = vcombine.high %v558, %v572
    %v577 = vcombine.low %v481, %v482
    %v578 = vcombine.high %v481, %v482
    %v579 = vcombine.low %v483, %v484
    %v580 = vcombine.high %v483, %v484
    %v582 = vunpack.c.l.s4 1983009808
    %v583 = vunpack.c.0.s8 %v582
    %v584 = vlaneseq
    %v585 = vshrl.u32 %v584, 7
    %v586 = vsub.s32 %v583, %v585
    %v587 = vrot.slane %v577, %v586
    %v589 = vunpack.c.l.s4 1983009808
    %v590 = vunpack.c.0.s8 %v589
    %v591 = vlaneseq
    %v592 = vshrl.u32 %v591, 7
    %v593 = vsub.s32 %v590, %v592
    %v594 = vrot.slane %v578, %v593
    %v596 = vunpack.c.l.s4 1983009808
    %v597 = vunpack.c.0.s8 %v596
    %v598 = vlaneseq
    %v599 = vshrl.u32 %v598, 7
    %v600 = vsub.s32 %v597, %v599
    %v601 = vrot.slane %v579, %v600
    %v603 = vunpack.c.l.s4 1983009808
    %v604 = vunpack.c.0.s8 %v603
    %v605 = vlaneseq
    %v606 = vshrl.u32 %v605, 7
    %v607 = vsub.s32 %v604, %v606
    %v608 = vrot.slane %v580, %v607
    %v609 = vcombine.low %v587, %v601
    %v610 = vcombine.high %v587, %v601
    %v611 = vcombine.low %v594, %v608
    %v612 = vcombine.high %v594, %v608
    %v613 = vcombine.low %v485, %v486
    %v614 = vcombine.high %v485, %v486
    %v615 = vcombine.low %v487, %v488
    %v616 = vcombine.high %v487, %v488
    %v618 = vunpack.c.l.s4 1983009808
    %v619 = vunpack.c.0.s8 %v618
    %v620 = vlaneseq
    %v621 = vshrl.u32 %v620, 7
    %v622 = vsub.s32 %v619, %v621
    %v623 = vrot.slane %v613, %v622
    %v625 = vunpack.c.l.s4 1983009808
    %v626 = vunpack.c.0.s8 %v625
    %v627 = vlaneseq
    %v628 = vshrl.u32 %v627, 7
    %v629 = vsub.s32 %v626, %v628
    %v630 = vrot.slane %v614, %v629
    %v632 = vunpack.c.l.s4 1983009808
    %v633 = vunpack.c.0.s8 %v632
    %v634 = vlaneseq
    %v635 = vshrl.u32 %v634, 7
    %v636 = vsub.s32 %v633, %v635
    %v637 = vrot.slane %v615, %v636
    %v639 = vunpack.c.l.s4 1983009808
    %v640 = vunpack.c.0.s8 %v639
    %v641 = vlaneseq
    %v642 = vshrl.u32 %v641, 7
    %v643 = vsub.s32 %v640, %v642
    %v644 = vrot.slane %v616, %v643
    %v645 = vcombine.low %v623, %v637
    %v646 = vcombine.high %v623, %v637
    %v647 = vcombine.low %v630, %v644
    %v648 = vcombine.high %v630, %v644
    %v665 = vadd.f32 %v101, %v537
    %v666 = vadd.f32 %v102, %v573
    %v667 = vadd.f32 %v103, %v538
    %v668 = vadd.f32 %v104, %v574
    %v669 = vadd.f32 %v105, %v539
    %v670 = vadd.f32 %v106, %v575
    %v671 = vadd.f32 %v107, %v540
    %v672 = vadd.f32 %v108, %v576
    %v673 = vadd.f32 %v109, %v609
    %v674 = vadd.f32 %v110, %v645
    %v675 = vadd.f32 %v111, %v610
    %v676 = vadd.f32 %v112, %v646
    %v677 = vadd.f32 %v113, %v611
    %v678 = vadd.f32 %v114, %v647
    %v679 = vadd.f32 %v115, %v612
    %v680 = vadd.f32 %v116, %v648
    %v697 = vcombine.low %v665, %v667
    %v698 = vcombine.high %v665, %v667
    %v699 = vcombine.low %v669, %v671
    %v700 = vcombine.high %v669, %v671
    %v702 = vunpack.c.l.s4 1983009808
    %v703 = vunpack.c.0.s8 %v702
    %v704 = vlaneseq
    %v705 = vshrl.u32 %v704, 7
    %v706 = vsub.s32 %v703, %v705
    %v707 = vrot.slane %v697, %v706
    %v709 = vunpack.c.l.s4 1983009808
    %v710 = vunpack.c.0.s8 %v709
    %v711 = vlaneseq
    %v712 = vshrl.u32 %v711, 7
    %v713 = vsub.s32 %v710, %v712
    %v714 = vrot.slane %v698, %v713
    %v716 = vunpack.c.l.s4 1983009808
    %v717 = vunpack.c.0.s8 %v716
    %v718 = vlaneseq
    %v719 = vshrl.u32 %v718, 7
    %v720 = vsub.s32 %v717, %v719
    %v721 = vrot.slane %v699, %v720
    %v723 = vunpack.c.l.s4 1983009808
    %v724 = vunpack.c.0.s8 %v723
    %v725 = vlaneseq
    %v726 = vshrl.u32 %v725, 7
    %v727 = vsub.s32 %v724, %v726
    %v728 = vrot.slane %v700, %v727
    %v729 = vcombine.low %v707, %v721
    %v730 = vcombine.high %v707, %v721
    %v731 = vcombine.low %v714, %v728
    %v732 = vcombine.high %v714, %v728
    %v733 = vcombine.low %v666, %v668
    %v734 = vcombine.high %v666, %v668
    %v735 = vcombine.low %v670, %v672
    %v736 = vcombine.high %v670, %v672
    %v738 = vunpack.c.l.s4 1983009808
    %v739 = vunpack.c.0.s8 %v738
    %v740 = vlaneseq
    %v741 = vshrl.u32 %v740, 7
    %v742 = vsub.s32 %v739, %v741
    %v743 = vrot.slane %v733, %v742
    %v745 = vunpack.c.l.s4 1983009808
    %v746 = vunpack.c.0.s8 %v745
    %v747 = vlaneseq
    %v748 = vshrl.u32 %v747, 7
    %v749 = vsub.s32 %v746, %v748
    %v750 = vrot.slane %v734, %v749
    %v752 = vunpack.c.l.s4 1983009808
    %v753 = vunpack.c.0.s8 %v752
    %v754 = vlaneseq
    %v755 = vshrl.u32 %v754, 7
    %v756 = vsub.s32 %v753, %v755
    %v757 = vrot.slane %v735, %v756
    %v759 = vunpack.c.l.s4 1983009808
    %v760 = vunpack.c.0.s8 %v759
    %v761 = vlaneseq
    %v762 = vshrl.u32 %v761, 7
    %v763 = vsub.s32 %v760, %v762
    %v764 = vrot.slane %v736, %v763
    %v765 = vcombine.low %v743, %v757
    %v766 = vcombine.high %v743, %v757
    %v767 = vcombine.low %v750, %v764
    %v768 = vcombine.high %v750, %v764
    %v769 = vcombine.low %v673, %v675
    %v770 = vcombine.high %v673, %v675
    %v771 = vcombine.low %v677, %v679
    %v772 = vcombine.high %v677, %v679
    %v774 = vunpack.c.l.s4 1983009808
    %v775 = vunpack.c.0.s8 %v774
    %v776 = vlaneseq
    %v777 = vshrl.u32 %v776, 7
    %v778 = vsub.s32 %v775, %v777
    %v779 = vrot.slane %v769, %v778
    %v781 = vunpack.c.l.s4 1983009808
    %v782 = vunpack.c.0.s8 %v781
    %v783 = vlaneseq
    %v784 = vshrl.u32 %v783, 7
    %v785 = vsub.s32 %v782, %v784
    %v786 = vrot.slane %v770, %v785
    %v788 = vunpack.c.l.s4 1983009808
    %v789 = vunpack.c.0.s8 %v788
    %v790 = vlaneseq
    %v791 = vshrl.u32 %v790, 7
    %v792 = vsub.s32 %v789, %v791
    %v793 = vrot.slane %v771, %v792
    %v795 = vunpack.c.l.s4 1983009808
    %v796 = vunpack.c.0.s8 %v795
    %v797 = vlaneseq
    %v798 = vshrl.u32 %v797, 7
    %v799 = vsub.s32 %v796, %v798
    %v800 = vrot.slane %v772, %v799
    %v801 = vcombine.low %v779, %v793
    %v802 = vcombine.high %v779, %v793
    %v803 = vcombine.low %v786, %v800
    %v804 = vcombine.high %v786, %v800
    %v805 = vcombine.low %v674, %v676
    %v806 = vcombine.high %v674, %v676
    %v807 = vcombine.low %v678, %v680
    %v808 = vcombine.high %v678, %v680
    %v810 = vunpack.c.l.s4 1983009808
    %v811 = vunpack.c.0.s8 %v810
    %v812 = vlaneseq
    %v813 = vshrl.u32 %v812, 7
    %v814 = vsub.s32 %v811, %v813
    %v815 = vrot.slane %v805, %v814
    %v817 = vunpack.c.l.s4 1983009808
    %v818 = vunpack.c.0.s8 %v817
    %v819 = vlaneseq
    %v820 = vshrl.u32 %v819, 7
    %v821 = vsub.s32 %v818, %v820
    %v822 = vrot.slane %v806, %v821
    %v824 = vunpack.c.l.s4 1983009808
    %v825 = vunpack.c.0.s8 %v824
    %v826 = vlaneseq
    %v827 = vshrl.u32 %v826, 7
    %v828 = vsub.s32 %v825, %v827
    %v829 = vrot.slane %v807, %v828
    %v831 = vunpack.c.l.s4 1983009808
    %v832 = vunpack.c.0.s8 %v831
    %v833 = vlaneseq
    %v834 = vshrl.u32 %v833, 7
    %v835 = vsub.s32 %v832, %v834
    %v836 = vrot.slane %v808, %v835
    %v837 = vcombine.low %v815, %v829
    %v838 = vcombine.high %v815, %v829
    %v839 = vcombine.low %v822, %v836
    %v840 = vcombine.high %v822, %v836
    %v857 = vpack.c.bf16 %v801, %v729
    %v858 = vpack.c.bf16 %v802, %v730
    %v859 = vpack.c.bf16 %v803, %v731
    %v860 = vpack.c.bf16 %v804, %v732
    %v861 = vpack.c.bf16 %v837, %v765
    %v862 = vpack.c.bf16 %v838, %v766
    %v863 = vpack.c.bf16 %v839, %v767
    %v864 = vpack.c.bf16 %v840, %v768
    %v865 = vmul.f32 %v290, %v137
    %v866 = vmul.f32 %v295, %v138
    %v867 = vadd.f32 %v135, %v865
    %v868 = vadd.f32 %v136, %v866
    %v870 = vlaneseq
    %v871 = vshrl.u32 %v870, 7
    %v872 = vsub.s32 0, %v871
    %v873 = vrot.slane %v267, %v872
    %v1003 = vunpack.c.l.b16 %v139
    %v1004 = vunpack.c.l.b16 %v140
    %v1005 = vunpack.c.l.b16 %v141
    %v1006 = vunpack.c.l.b16 %v142
    %v1007 = vunpack.c.l.b16 %v143
    %v1008 = vunpack.c.l.b16 %v144
    %v1009 = vunpack.c.l.b16 %v145
    %v1010 = vunpack.c.l.b16 %v146
    %v1011 = vunpack.c.l.b16 %v147
    %v1012 = vunpack.c.l.b16 %v148
    %v1013 = vunpack.c.l.b16 %v149
    %v1014 = vunpack.c.l.b16 %v150
    %v1015 = vunpack.c.l.b16 %v151
    %v1016 = vunpack.c.l.b16 %v152
    %v1017 = vunpack.c.l.b16 %v153
    %v1018 = vunpack.c.l.b16 %v154
    %v1019 = vunpack.c.l.b16 %v155
    %v1020 = vunpack.c.l.b16 %v156
    %v1021 = vunpack.c.l.b16 %v157
    %v1022 = vunpack.c.l.b16 %v158
    %v1023 = vunpack.c.l.b16 %v159
    %v1024 = vunpack.c.l.b16 %v160
    %v1025 = vunpack.c.l.b16 %v161
    %v1026 = vunpack.c.l.b16 %v162
    %v1027 = vunpack.c.l.b16 %v163
    %v1028 = vunpack.c.l.b16 %v164
    %v1029 = vunpack.c.l.b16 %v165
    %v1030 = vunpack.c.l.b16 %v166
    %v1031 = vunpack.c.l.b16 %v167
    %v1032 = vunpack.c.l.b16 %v168
    %v1033 = vunpack.c.l.b16 %v169
    %v1034 = vunpack.c.l.b16 %v170
    %v1035 = vunpack.c.l.b16 %v171
    %v1036 = vunpack.c.l.b16 %v172
    %v1037 = vunpack.c.l.b16 %v173
    %v1038 = vunpack.c.l.b16 %v174
    %v1039 = vunpack.c.l.b16 %v175
    %v1040 = vunpack.c.l.b16 %v176
    %v1041 = vunpack.c.l.b16 %v177
    %v1042 = vunpack.c.l.b16 %v178
    %v1043 = vunpack.c.l.b16 %v179
    %v1044 = vunpack.c.l.b16 %v180
    %v1045 = vunpack.c.l.b16 %v181
    %v1046 = vunpack.c.l.b16 %v182
    %v1047 = vunpack.c.l.b16 %v183
    %v1048 = vunpack.c.l.b16 %v184
    %v1049 = vunpack.c.l.b16 %v185
    %v1050 = vunpack.c.l.b16 %v186
    %v1051 = vunpack.c.l.b16 %v187
    %v1052 = vunpack.c.l.b16 %v188
    %v1053 = vunpack.c.l.b16 %v189
    %v1054 = vunpack.c.l.b16 %v190
    %v1055 = vunpack.c.l.b16 %v191
    %v1056 = vunpack.c.l.b16 %v192
    %v1057 = vunpack.c.l.b16 %v193
    %v1058 = vunpack.c.l.b16 %v194
    %v1059 = vunpack.c.l.b16 %v195
    %v1060 = vunpack.c.l.b16 %v196
    %v1061 = vunpack.c.l.b16 %v197
    %v1062 = vunpack.c.l.b16 %v198
    %v1063 = vunpack.c.l.b16 %v199
    %v1064 = vunpack.c.l.b16 %v200
    %v1065 = vunpack.c.l.b16 %v201
    %v1066 = vunpack.c.l.b16 %v202
    %v1067 = vunpack.c.l.b16 %v203
    %v1068 = vunpack.c.l.b16 %v204
    %v1069 = vunpack.c.l.b16 %v205
    %v1070 = vunpack.c.l.b16 %v206
    %v1071 = vunpack.c.l.b16 %v207
    %v1072 = vunpack.c.l.b16 %v208
    %v1073 = vunpack.c.l.b16 %v209
    %v1074 = vunpack.c.l.b16 %v210
    %v1075 = vunpack.c.l.b16 %v211
    %v1076 = vunpack.c.l.b16 %v212
    %v1077 = vunpack.c.l.b16 %v213
    %v1078 = vunpack.c.l.b16 %v214
    %v1079 = vunpack.c.l.b16 %v215
    %v1080 = vunpack.c.l.b16 %v216
    %v1081 = vunpack.c.l.b16 %v217
    %v1082 = vunpack.c.l.b16 %v218
    %v1083 = vunpack.c.l.b16 %v219
    %v1084 = vunpack.c.l.b16 %v220
    %v1085 = vunpack.c.l.b16 %v221
    %v1086 = vunpack.c.l.b16 %v222
    %v1087 = vunpack.c.l.b16 %v223
    %v1088 = vunpack.c.l.b16 %v224
    %v1089 = vunpack.c.l.b16 %v225
    %v1090 = vunpack.c.l.b16 %v226
    %v1091 = vunpack.c.l.b16 %v227
    %v1092 = vunpack.c.l.b16 %v228
    %v1093 = vunpack.c.l.b16 %v229
    %v1094 = vunpack.c.l.b16 %v230
    %v1095 = vunpack.c.l.b16 %v231
    %v1096 = vunpack.c.l.b16 %v232
    %v1097 = vunpack.c.l.b16 %v233
    %v1098 = vunpack.c.l.b16 %v234
    %v1099 = vunpack.c.l.b16 %v235
    %v1100 = vunpack.c.l.b16 %v236
    %v1101 = vunpack.c.l.b16 %v237
    %v1102 = vunpack.c.l.b16 %v238
    %v1103 = vunpack.c.l.b16 %v239
    %v1104 = vunpack.c.l.b16 %v240
    %v1105 = vunpack.c.l.b16 %v241
    %v1106 = vunpack.c.l.b16 %v242
    %v1107 = vunpack.c.l.b16 %v243
    %v1108 = vunpack.c.l.b16 %v244
    %v1109 = vunpack.c.l.b16 %v245
    %v1110 = vunpack.c.l.b16 %v246
    %v1111 = vunpack.c.l.b16 %v247
    %v1112 = vunpack.c.l.b16 %v248
    %v1113 = vunpack.c.l.b16 %v249
    %v1114 = vunpack.c.l.b16 %v250
    %v1115 = vunpack.c.l.b16 %v251
    %v1116 = vunpack.c.l.b16 %v252
    %v1117 = vunpack.c.l.b16 %v253
    %v1118 = vunpack.c.l.b16 %v254
    %v1119 = vunpack.c.l.b16 %v255
    %v1120 = vunpack.c.l.b16 %v256
    %v1121 = vunpack.c.l.b16 %v257
    %v1122 = vunpack.c.l.b16 %v258
    %v1123 = vunpack.c.l.b16 %v259
    %v1124 = vunpack.c.l.b16 %v260
    %v1125 = vunpack.c.l.b16 %v261
    %v1126 = vunpack.c.l.b16 %v262
    %v1127 = vunpack.c.l.b16 %v263
    %v1128 = vunpack.c.l.b16 %v264
    %v1129 = vunpack.c.l.b16 %v265
    %v1130 = vunpack.c.l.b16 %v266
    %v1131 = vpack.c.b16 %v1004, %v1003
    %v1132 = vpack.c.b16 %v1006, %v1005
    %v1133 = vpack.c.b16 %v1008, %v1007
    %v1134 = vpack.c.b16 %v1010, %v1009
    %v1135 = vpack.c.b16 %v1012, %v1011
    %v1136 = vpack.c.b16 %v1014, %v1013
    %v1137 = vpack.c.b16 %v1016, %v1015
    %v1138 = vpack.c.b16 %v1018, %v1017
    %v1139 = vpack.c.b16 %v1020, %v1019
    %v1140 = vpack.c.b16 %v1022, %v1021
    %v1141 = vpack.c.b16 %v1024, %v1023
    %v1142 = vpack.c.b16 %v1026, %v1025
    %v1143 = vpack.c.b16 %v1028, %v1027
    %v1144 = vpack.c.b16 %v1030, %v1029
    %v1145 = vpack.c.b16 %v1032, %v1031
    %v1146 = vpack.c.b16 %v1034, %v1033
    %v1147 = vpack.c.b16 %v1036, %v1035
    %v1148 = vpack.c.b16 %v1038, %v1037
    %v1149 = vpack.c.b16 %v1040, %v1039
    %v1150 = vpack.c.b16 %v1042, %v1041
    %v1151 = vpack.c.b16 %v1044, %v1043
    %v1152 = vpack.c.b16 %v1046, %v1045
    %v1153 = vpack.c.b16 %v1048, %v1047
    %v1154 = vpack.c.b16 %v1050, %v1049
    %v1155 = vpack.c.b16 %v1052, %v1051
    %v1156 = vpack.c.b16 %v1054, %v1053
    %v1157 = vpack.c.b16 %v1056, %v1055
    %v1158 = vpack.c.b16 %v1058, %v1057
    %v1159 = vpack.c.b16 %v1060, %v1059
    %v1160 = vpack.c.b16 %v1062, %v1061
    %v1161 = vpack.c.b16 %v1064, %v1063
    %v1162 = vpack.c.b16 %v1066, %v1065
    %v1163 = vpack.c.b16 %v1068, %v1067
    %v1164 = vpack.c.b16 %v1070, %v1069
    %v1165 = vpack.c.b16 %v1072, %v1071
    %v1166 = vpack.c.b16 %v1074, %v1073
    %v1167 = vpack.c.b16 %v1076, %v1075
    %v1168 = vpack.c.b16 %v1078, %v1077
    %v1169 = vpack.c.b16 %v1080, %v1079
    %v1170 = vpack.c.b16 %v1082, %v1081
    %v1171 = vpack.c.b16 %v1084, %v1083
    %v1172 = vpack.c.b16 %v1086, %v1085
    %v1173 = vpack.c.b16 %v1088, %v1087
    %v1174 = vpack.c.b16 %v1090, %v1089
    %v1175 = vpack.c.b16 %v1092, %v1091
    %v1176 = vpack.c.b16 %v1094, %v1093
    %v1177 = vpack.c.b16 %v1096, %v1095
    %v1178 = vpack.c.b16 %v1098, %v1097
    %v1179 = vpack.c.b16 %v1100, %v1099
    %v1180 = vpack.c.b16 %v1102, %v1101
    %v1181 = vpack.c.b16 %v1104, %v1103
    %v1182 = vpack.c.b16 %v1106, %v1105
    %v1183 = vpack.c.b16 %v1108, %v1107
    %v1184 = vpack.c.b16 %v1110, %v1109
    %v1185 = vpack.c.b16 %v1112, %v1111
    %v1186 = vpack.c.b16 %v1114, %v1113
    %v1187 = vpack.c.b16 %v1116, %v1115
    %v1188 = vpack.c.b16 %v1118, %v1117
    %v1189 = vpack.c.b16 %v1120, %v1119
    %v1190 = vpack.c.b16 %v1122, %v1121
    %v1191 = vpack.c.b16 %v1124, %v1123
    %v1192 = vpack.c.b16 %v1126, %v1125
    %v1193 = vpack.c.b16 %v1128, %v1127
    %v1194 = vpack.c.b16 %v1130, %v1129
    %1259 = vmatprep.subr.bf16.mxu0 0
    %1260 = vmatpush1.bf16.msra.mxu0 %v1131
    %1261 = vmatprep.subr.bf16.mxu0 0
    %1262 = vmatpush1.bf16.msra.mxu0 %v1132
    %1263 = vmatprep.subr.bf16.mxu0 0
    %1264 = vmatpush1.bf16.msra.mxu0 %v1133
    %1265 = vmatprep.subr.bf16.mxu0 0
    %1266 = vmatpush1.bf16.msra.mxu0 %v1134
    %1267 = vmatprep.subr.bf16.mxu0 0
    %1268 = vmatpush1.bf16.msra.mxu0 %v1135
    %1269 = vmatprep.subr.bf16.mxu0 0
    %1270 = vmatpush1.bf16.msra.mxu0 %v1136
    %1271 = vmatprep.subr.bf16.mxu0 0
    %1272 = vmatpush1.bf16.msra.mxu0 %v1137
    %1273 = vmatprep.subr.bf16.mxu0 0
    %1274 = vmatpush1.bf16.msra.mxu0 %v1138
    %1275 = vmatprep.subr.bf16.mxu0 0
    %1276 = vmatpush1.bf16.msra.mxu0 %v1139
    %1277 = vmatprep.subr.bf16.mxu0 0
    %1278 = vmatpush1.bf16.msra.mxu0 %v1140
    %1279 = vmatprep.subr.bf16.mxu0 0
    %1280 = vmatpush1.bf16.msra.mxu0 %v1141
    %1281 = vmatprep.subr.bf16.mxu0 0
    %1282 = vmatpush1.bf16.msra.mxu0 %v1142
    %1283 = vmatprep.subr.bf16.mxu0 0
    %1284 = vmatpush1.bf16.msra.mxu0 %v1143
    %1285 = vmatprep.subr.bf16.mxu0 0
    %1286 = vmatpush1.bf16.msra.mxu0 %v1144
    %1287 = vmatprep.subr.bf16.mxu0 0
    %1288 = vmatpush1.bf16.msra.mxu0 %v1145
    %1289 = vmatprep.subr.bf16.mxu0 0
    %1290 = vmatpush1.bf16.msra.mxu0 %v1146
    %1291 = vmatprep.mubr.bf16.mxu0 %v858
    %1292 = vmatmul.mubr.bf16.gmra.mrb[0].mxu0 %v857
    %v1293 = vpop.f32.mrb[0].mxu0
    %v1294 = vadd.f32 %v873, %v1293
    %v1295 = vpop.f32.mrb[0].mxu0
    %v1296 = vpop.f32.mrb[0].mxu0
    %v1297 = vadd.f32 %v873, %v1296
    %v1298 = vpop.f32.mrb[0].mxu0
    %1299 = vdwg.mxu0
    %1300 = vmatprep.subr.bf16.mxu0 0
    %1301 = vmatpush1.bf16.msra.mxu0 %v1147
    %1302 = vmatprep.subr.bf16.mxu0 0
    %1303 = vmatpush1.bf16.msra.mxu0 %v1148
    %1304 = vmatprep.subr.bf16.mxu0 0
    %1305 = vmatpush1.bf16.msra.mxu0 %v1149
    %1306 = vmatprep.subr.bf16.mxu0 0
    %1307 = vmatpush1.bf16.msra.mxu0 %v1150
    %1308 = vmatprep.subr.bf16.mxu0 0
    %1309 = vmatpush1.bf16.msra.mxu0 %v1151
    %1310 = vmatprep.subr.bf16.mxu0 0
    %1311 = vmatpush1.bf16.msra.mxu0 %v1152
    %1312 = vmatprep.subr.bf16.mxu0 0
    %1313 = vmatpush1.bf16.msra.mxu0 %v1153
    %1314 = vmatprep.subr.bf16.mxu0 0
    %1315 = vmatpush1.bf16.msra.mxu0 %v1154
    %1316 = vmatprep.subr.bf16.mxu0 0
    %1317 = vmatpush1.bf16.msra.mxu0 %v1155
    %1318 = vmatprep.subr.bf16.mxu0 0
    %1319 = vmatpush1.bf16.msra.mxu0 %v1156
    %1320 = vmatprep.subr.bf16.mxu0 0
    %1321 = vmatpush1.bf16.msra.mxu0 %v1157
    %1322 = vmatprep.subr.bf16.mxu0 0
    %1323 = vmatpush1.bf16.msra.mxu0 %v1158
    %1324 = vmatprep.subr.bf16.mxu0 0
    %1325 = vmatpush1.bf16.msra.mxu0 %v1159
    %1326 = vmatprep.subr.bf16.mxu0 0
    %1327 = vmatpush1.bf16.msra.mxu0 %v1160
    %1328 = vmatprep.subr.bf16.mxu0 0
    %1329 = vmatpush1.bf16.msra.mxu0 %v1161
    %1330 = vmatprep.subr.bf16.mxu0 0
    %1331 = vmatpush1.bf16.msra.mxu0 %v1162
    %1332 = vmatprep.mubr.bf16.mxu0 %v860
    %1333 = vmatmul.mubr.bf16.gmra.mrb[0].mxu0 %v859
    %v1334 = vpop.f32.mrb[0].mxu0
    %v1335 = vadd.f32 %v1294, %v1334
    %v1336 = vpop.f32.mrb[0].mxu0
    %v1337 = vpop.f32.mrb[0].mxu0
    %v1338 = vadd.f32 %v1297, %v1337
    %v1339 = vpop.f32.mrb[0].mxu0
    %1340 = vdwg.mxu0
    %1341 = vmatprep.subr.bf16.mxu0 0
    %1342 = vmatpush1.bf16.msra.mxu0 %v1163
    %1343 = vmatprep.subr.bf16.mxu0 0
    %1344 = vmatpush1.bf16.msra.mxu0 %v1164
    %1345 = vmatprep.subr.bf16.mxu0 0
    %1346 = vmatpush1.bf16.msra.mxu0 %v1165
    %1347 = vmatprep.subr.bf16.mxu0 0
    %1348 = vmatpush1.bf16.msra.mxu0 %v1166
    %1349 = vmatprep.subr.bf16.mxu0 0
    %1350 = vmatpush1.bf16.msra.mxu0 %v1167
    %1351 = vmatprep.subr.bf16.mxu0 0
    %1352 = vmatpush1.bf16.msra.mxu0 %v1168
    %1353 = vmatprep.subr.bf16.mxu0 0
    %1354 = vmatpush1.bf16.msra.mxu0 %v1169
    %1355 = vmatprep.subr.bf16.mxu0 0
    %1356 = vmatpush1.bf16.msra.mxu0 %v1170
    %1357 = vmatprep.subr.bf16.mxu0 0
    %1358 = vmatpush1.bf16.msra.mxu0 %v1171
    %1359 = vmatprep.subr.bf16.mxu0 0
    %1360 = vmatpush1.bf16.msra.mxu0 %v1172
    %1361 = vmatprep.subr.bf16.mxu0 0
    %1362 = vmatpush1.bf16.msra.mxu0 %v1173
    %1363 = vmatprep.subr.bf16.mxu0 0
    %1364 = vmatpush1.bf16.msra.mxu0 %v1174
    %1365 = vmatprep.subr.bf16.mxu0 0
    %1366 = vmatpush1.bf16.msra.mxu0 %v1175
    %1367 = vmatprep.subr.bf16.mxu0 0
    %1368 = vmatpush1.bf16.msra.mxu0 %v1176
    %1369 = vmatprep.subr.bf16.mxu0 0
    %1370 = vmatpush1.bf16.msra.mxu0 %v1177
    %1371 = vmatprep.subr.bf16.mxu0 0
    %1372 = vmatpush1.bf16.msra.mxu0 %v1178
    %1373 = vmatprep.mubr.bf16.mxu0 %v862
    %1374 = vmatmul.mubr.bf16.gmra.mrb[0].mxu0 %v861
    %v1375 = vpop.f32.mrb[0].mxu0
    %v1376 = vadd.f32 %v1335, %v1375
    %v1377 = vpop.f32.mrb[0].mxu0
    %v1378 = vpop.f32.mrb[0].mxu0
    %v1379 = vadd.f32 %v1338, %v1378
    %v1380 = vpop.f32.mrb[0].mxu0
    %1381 = vdwg.mxu0
    %1382 = vmatprep.subr.bf16.mxu0 0
    %1383 = vmatpush1.bf16.msra.mxu0 %v1179
    %1384 = vmatprep.subr.bf16.mxu0 0
    %1385 = vmatpush1.bf16.msra.mxu0 %v1180
    %1386 = vmatprep.subr.bf16.mxu0 0
    %1387 = vmatpush1.bf16.msra.mxu0 %v1181
    %1388 = vmatprep.subr.bf16.mxu0 0
    %1389 = vmatpush1.bf16.msra.mxu0 %v1182
    %1390 = vmatprep.subr.bf16.mxu0 0
    %1391 = vmatpush1.bf16.msra.mxu0 %v1183
    %1392 = vmatprep.subr.bf16.mxu0 0
    %1393 = vmatpush1.bf16.msra.mxu0 %v1184
    %1394 = vmatprep.subr.bf16.mxu0 0
    %1395 = vmatpush1.bf16.msra.mxu0 %v1185
    %1396 = vmatprep.subr.bf16.mxu0 0
    %1397 = vmatpush1.bf16.msra.mxu0 %v1186
    %1398 = vmatprep.subr.bf16.mxu0 0
    %1399 = vmatpush1.bf16.msra.mxu0 %v1187
    %1400 = vmatprep.subr.bf16.mxu0 0
    %1401 = vmatpush1.bf16.msra.mxu0 %v1188
    %1402 = vmatprep.subr.bf16.mxu0 0
    %1403 = vmatpush1.bf16.msra.mxu0 %v1189
    %1404 = vmatprep.subr.bf16.mxu0 0
    %1405 = vmatpush1.bf16.msra.mxu0 %v1190
    %1406 = vmatprep.subr.bf16.mxu0 0
    %1407 = vmatpush1.bf16.msra.mxu0 %v1191
    %1408 = vmatprep.subr.bf16.mxu0 0
    %1409 = vmatpush1.bf16.msra.mxu0 %v1192
    %1410 = vmatprep.subr.bf16.mxu0 0
    %1411 = vmatpush1.bf16.msra.mxu0 %v1193
    %1412 = vmatprep.subr.bf16.mxu0 0
    %1413 = vmatpush1.bf16.msra.mxu0 %v1194
    %1414 = vmatprep.mubr.bf16.mxu0 %v864
    %1415 = vmatmul.mubr.bf16.gmra.mrb[0].mxu0 %v863
    %v1416 = vpop.f32.mrb[0].mxu0
    %v1417 = vadd.f32 %v1376, %v1416
    %v1418 = vpop.f32.mrb[0].mxu0
    %v1419 = vpop.f32.mrb[0].mxu0
    %v1420 = vadd.f32 %v1379, %v1419
    %v1421 = vpop.f32.mrb[0].mxu0
    %1422 = vdwg.mxu0
    %v1423 = vmax.f32 %v1417, 0.0
    %v1424 = vmax.f32 %v1420, 0.0
    %v1426 = vlaneseq
    %v1427 = vshrl.u32 %v1426, 7
    %v1428 = vsub.s32 0, %v1427
    %v1429 = vrot.slane %v284, %v1428
    %1431 = vmatprep.subr.mxu0 0.0
    %1432 = vmatpush1.msra.mxu0 %v268
    %1433 = vmatprep.subr.mxu0 0.0
    %1434 = vmatpush1.msra.mxu0 %v269
    %1435 = vmatprep.subr.mxu0 0.0
    %1436 = vmatpush1.msra.mxu0 %v270
    %1437 = vmatprep.subr.mxu0 0.0
    %1438 = vmatpush1.msra.mxu0 %v271
    %1439 = vmatprep.subr.mxu0 0.0
    %1440 = vmatpush1.msra.mxu0 %v272
    %1441 = vmatprep.subr.mxu0 0.0
    %1442 = vmatpush1.msra.mxu0 %v273
    %1443 = vmatprep.subr.mxu0 0.0
    %1444 = vmatpush1.msra.mxu0 %v274
    %1445 = vmatprep.subr.mxu0 0.0
    %1446 = vmatpush1.msra.mxu0 %v275
    %1447 = vmatprep.subr.mxu0 0.0
    %1448 = vmatpush1.msra.mxu0 %v276
    %1449 = vmatprep.subr.mxu0 0.0
    %1450 = vmatpush1.msra.mxu0 %v277
    %1451 = vmatprep.subr.mxu0 0.0
    %1452 = vmatpush1.msra.mxu0 %v278
    %1453 = vmatprep.subr.mxu0 0.0
    %1454 = vmatpush1.msra.mxu0 %v279
    %1455 = vmatprep.subr.mxu0 0.0
    %1456 = vmatpush1.msra.mxu0 %v280
    %1457 = vmatprep.subr.mxu0 0.0
    %1458 = vmatpush1.msra.mxu0 %v281
    %1459 = vmatprep.subr.mxu0 0.0
    %1460 = vmatpush1.msra.mxu0 %v282
    %1461 = vmatprep.subr.mxu0 0.0
    %1462 = vmatpush1.msra.mxu0 %v283
    %1463 = vmatprep.subr.mxu0 0.0
    %1464 = vmatpush1.msra.mxu0 0.0
    %1465 = vmatprep.subr.mxu0 0.0
    %1466 = vmatpush1.msra.mxu0 0.0
    %1467 = vmatprep.subr.mxu0 0.0
    %1468 = vmatpush1.msra.mxu0 0.0
    %1469 = vmatprep.subr.mxu0 0.0
    %1470 = vmatpush1.msra.mxu0 0.0
    %1471 = vmatprep.subr.mxu0 0.0
    %1472 = vmatpush1.msra.mxu0 0.0
    %1473 = vmatprep.subr.mxu0 0.0
    %1474 = vmatpush1.msra.mxu0 0.0
    %1475 = vmatprep.subr.mxu0 0.0
    %1476 = vmatpush1.msra.mxu0 0.0
    %1477 = vmatprep.subr.mxu0 0.0
    %1478 = vmatpush1.msra.mxu0 0.0
    %1479 = vmatprep.subr.mxu0 0.0
    %1480 = vmatpush1.msra.mxu0 0.0
    %1481 = vmatprep.subr.mxu0 0.0
    %1482 = vmatpush1.msra.mxu0 0.0
    %1483 = vmatprep.subr.mxu0 0.0
    %1484 = vmatpush1.msra.mxu0 0.0
    %1485 = vmatprep.subr.mxu0 0.0
    %1486 = vmatpush1.msra.mxu0 0.0
    %1487 = vmatprep.subr.mxu0 0.0
    %1488 = vmatpush1.msra.mxu0 0.0
    %1489 = vmatprep.subr.mxu0 0.0
    %1490 = vmatpush1.msra.mxu0 0.0
    %1491 = vmatprep.subr.mxu0 0.0
    %1492 = vmatpush1.msra.mxu0 0.0
    %1493 = vmatprep.subr.mxu0 0.0
    %1494 = vmatpush1.msra.mxu0 0.0
    %1495 = vmatprep.mubr.f32.mxu0 0.0
    %1496 = vmatmul.mubr.f32.gmra.mrb[0].mxu0 %v1423
    %v1497 = vpop.f32.mrb[0].mxu0
    %v1498 = vadd.f32 %v1429, %v1497
    %v1499 = vpop.f32.mrb[0].mxu0
    %1500 = vmatprep.mubr.f32.mxu0 0.0
    %1501 = vmatmul.mubr.f32.gmra.mrb[0].mxu0 %v1424
    %v1502 = vpop.f32.mrb[0].mxu0
    %v1503 = vadd.f32 %v1429, %v1502
    %v1504 = vpop.f32.mrb[0].mxu0
    %1505 = vdwg.mxu0
    %vm1506 = vcmask 64512
    %v1507 = vsel %vm1506, %v867, -inf
    %1508 = vmax.xlane.f32.xlu0 %v1507
    %v1509 = vpop.xlane.xlu0 %1508
    %v1510 = vsel %vm1506, %v868, -inf
    %1511 = vmax.xlane.f32.xlu0 %v1510
    %v1512 = vpop.xlane.xlu0 %1511
    %v1513 = vsub.f32 %v867, %v1509
    %v1514 = vsub.f32 %v868, %v1512
    %v1515 = vmul.f32 %v1513, 1.442695
    %v1516 = vpow.pop %v1515
    %v1517 = vmul.f32 %v1514, 1.442695
    %v1518 = vpow.pop %v1517
    %v1519 = vsel %vm1506, %v1516, 0.0
    %1520 = vadd.xlane.f32.xlu0 %v1519
    %v1521 = vpop.xlane.xlu0 %1520
    %v1522 = vsel %vm1506, %v1518, 0.0
    %1523 = vadd.xlane.f32.xlu0 %v1522
    %v1524 = vpop.xlane.xlu0 %1523
    %v1525 = vlog2.pop %v1521
    %v1526 = vmul.f32 %v1525, 0.6931472
    %v1527 = vlog2.pop %v1524
    %v1528 = vmul.f32 %v1527, 0.6931472
    %v1529 = vsub.f32 %v1513, %v1526
    %v1530 = vsub.f32 %v1514, %v1528
    %v1531 = vsel %vm1506, %v1498, -inf
    %1532 = vmax.xlane.f32.xlu0 %v1531
    %v1533 = vpop.xlane.xlu0 %1532
    %v1534 = vsel %vm1506, %v1503, -inf
    %1535 = vmax.xlane.f32.xlu0 %v1534
    %v1536 = vpop.xlane.xlu0 %1535
    %v1537 = vsub.f32 %v1498, %v1533
    %v1538 = vsub.f32 %v1503, %v1536
    %v1539 = vmul.f32 %v1537, 1.442695
    %v1540 = vpow.pop %v1539
    %v1541 = vmul.f32 %v1538, 1.442695
    %v1542 = vpow.pop %v1541
    %v1543 = vsel %vm1506, %v1540, 0.0
    %1544 = vadd.xlane.f32.xlu0 %v1543
    %v1545 = vpop.xlane.xlu0 %1544
    %v1546 = vsel %vm1506, %v1542, 0.0
    %1547 = vadd.xlane.f32.xlu0 %v1546
    %v1548 = vpop.xlane.xlu0 %1547
    %v1549 = vlog2.pop %v1545
    %v1550 = vmul.f32 %v1549, 0.6931472
    %v1551 = vlog2.pop %v1548
    %v1552 = vmul.f32 %v1551, 0.6931472
    %v1553 = vsub.f32 %v1537, %v1550
    %v1554 = vsub.f32 %v1538, %v1552
    %v1555 = vmul.f32 %v1529, 1.442695
    %v1556 = vpow.pop %v1555
    %v1557 = vmul.f32 %v1530, 1.442695
    %v1558 = vpow.pop %v1557
    %v1559 = vsub.f32 %v1529, %v1553
    %v1560 = vsub.f32 %v1530, %v1554
    %v1561 = vmul.f32 %v1556, %v1559
    %v1562 = vmul.f32 %v1558, %v1560
    %v1563 = vsel %vm1506, %v1561, 0.0
    %1564 = vadd.xlane.f32.xlu0 %v1563
    %v1565 = vpop.xlane.xlu0 %1564
    %v1566 = vsel %vm1506, %v1562, 0.0
    %1567 = vadd.xlane.f32.xlu0 %v1566
    %v1568 = vpop.xlane.xlu0 %1567
    %v1569 = vadd.f32 %v1565, 0.0
    %v1570 = vadd.f32 %v1568, 0.0
    %s1571 = scalar_lea.vmem [#allocation2], 16
    %v1572 = vld [vmem:[%s1571] sm:$0xff]
    %v1573 = vld [vmem:[%s1571 + $0x8] sm:$0xff]
    %1575 = vset.pattern.permute.xlu0 0
    %1576 = vperm.xlu0 %1575, %v1572
    %v1577 = vpop.permute.xlu0 %1576
    %1580 = vset.pattern.permute.xlu0 0
    %1581 = vperm.xlu0 %1580, %v1573
    %v1582 = vpop.permute.xlu0 %1581
    %v1584 = vmul.f32 %v1577, %v345
    %v1585 = vmul.f32 %v1577, %v346
    %v1586 = vmul.f32 %v1577, %v347
    %v1587 = vmul.f32 %v1577, %v348
    %v1588 = vmul.f32 %v1577, %v381
    %v1589 = vmul.f32 %v1577, %v382
    %v1590 = vmul.f32 %v1577, %v383
    %v1591 = vmul.f32 %v1577, %v384
    %v1592 = vmul.f32 %v1582, %v417
    %v1593 = vmul.f32 %v1582, %v418
    %v1594 = vmul.f32 %v1582, %v419
    %v1595 = vmul.f32 %v1582, %v420
    %v1596 = vmul.f32 %v1582, %v453
    %v1597 = vmul.f32 %v1582, %v454
    %v1598 = vmul.f32 %v1582, %v455
    %v1599 = vmul.f32 %v1582, %v456
    %v1616 = vcombine.low %v1584, %v1585
    %v1617 = vcombine.high %v1584, %v1585
    %v1618 = vcombine.low %v1586, %v1587
    %v1619 = vcombine.high %v1586, %v1587
    %v1621 = vunpack.c.l.s4 1983009808
    %v1622 = vunpack.c.0.s8 %v1621
    %v1623 = vlaneseq
    %v1624 = vshrl.u32 %v1623, 7
    %v1625 = vsub.s32 %v1622, %v1624
    %v1626 = vrot.slane %v1616, %v1625
    %v1628 = vunpack.c.l.s4 1983009808
    %v1629 = vunpack.c.0.s8 %v1628
    %v1630 = vlaneseq
    %v1631 = vshrl.u32 %v1630, 7
    %v1632 = vsub.s32 %v1629, %v1631
    %v1633 = vrot.slane %v1617, %v1632
    %v1635 = vunpack.c.l.s4 1983009808
    %v1636 = vunpack.c.0.s8 %v1635
    %v1637 = vlaneseq
    %v1638 = vshrl.u32 %v1637, 7
    %v1639 = vsub.s32 %v1636, %v1638
    %v1640 = vrot.slane %v1618, %v1639
    %v1642 = vunpack.c.l.s4 1983009808
    %v1643 = vunpack.c.0.s8 %v1642
    %v1644 = vlaneseq
    %v1645 = vshrl.u32 %v1644, 7
    %v1646 = vsub.s32 %v1643, %v1645
    %v1647 = vrot.slane %v1619, %v1646
    %v1648 = vcombine.low %v1626, %v1640
    %v1649 = vcombine.high %v1626, %v1640
    %v1650 = vcombine.low %v1633, %v1647
    %v1651 = vcombine.high %v1633, %v1647
    %v1652 = vcombine.low %v1588, %v1589
    %v1653 = vcombine.high %v1588, %v1589
    %v1654 = vcombine.low %v1590, %v1591
    %v1655 = vcombine.high %v1590, %v1591
    %v1657 = vunpack.c.l.s4 1983009808
    %v1658 = vunpack.c.0.s8 %v1657
    %v1659 = vlaneseq
    %v1660 = vshrl.u32 %v1659, 7
    %v1661 = vsub.s32 %v1658, %v1660
    %v1662 = vrot.slane %v1652, %v1661
    %v1664 = vunpack.c.l.s4 1983009808
    %v1665 = vunpack.c.0.s8 %v1664
    %v1666 = vlaneseq
    %v1667 = vshrl.u32 %v1666, 7
    %v1668 = vsub.s32 %v1665, %v1667
    %v1669 = vrot.slane %v1653, %v1668
    %v1671 = vunpack.c.l.s4 1983009808
    %v1672 = vunpack.c.0.s8 %v1671
    %v1673 = vlaneseq
    %v1674 = vshrl.u32 %v1673, 7
    %v1675 = vsub.s32 %v1672, %v1674
    %v1676 = vrot.slane %v1654, %v1675
    %v1678 = vunpack.c.l.s4 1983009808
    %v1679 = vunpack.c.0.s8 %v1678
    %v1680 = vlaneseq
    %v1681 = vshrl.u32 %v1680, 7
    %v1682 = vsub.s32 %v1679, %v1681
    %v1683 = vrot.slane %v1655, %v1682
    %v1684 = vcombine.low %v1662, %v1676
    %v1685 = vcombine.high %v1662, %v1676
    %v1686 = vcombine.low %v1669, %v1683
    %v1687 = vcombine.high %v1669, %v1683
    %v1688 = vcombine.low %v1592, %v1593
    %v1689 = vcombine.high %v1592, %v1593
    %v1690 = vcombine.low %v1594, %v1595
    %v1691 = vcombine.high %v1594, %v1595
    %v1693 = vunpack.c.l.s4 1983009808
    %v1694 = vunpack.c.0.s8 %v1693
    %v1695 = vlaneseq
    %v1696 = vshrl.u32 %v1695, 7
    %v1697 = vsub.s32 %v1694, %v1696
    %v1698 = vrot.slane %v1688, %v1697
    %v1700 = vunpack.c.l.s4 1983009808
    %v1701 = vunpack.c.0.s8 %v1700
    %v1702 = vlaneseq
    %v1703 = vshrl.u32 %v1702, 7
    %v1704 = vsub.s32 %v1701, %v1703
    %v1705 = vrot.slane %v1689, %v1704
    %v1707 = vunpack.c.l.s4 1983009808
    %v1708 = vunpack.c.0.s8 %v1707
    %v1709 = vlaneseq
    %v1710 = vshrl.u32 %v1709, 7
    %v1711 = vsub.s32 %v1708, %v1710
    %v1712 = vrot.slane %v1690, %v1711
    %v1714 = vunpack.c.l.s4 1983009808
    %v1715 = vunpack.c.0.s8 %v1714
    %v1716 = vlaneseq
    %v1717 = vshrl.u32 %v1716, 7
    %v1718 = vsub.s32 %v1715, %v1717
    %v1719 = vrot.slane %v1691, %v1718
    %v1720 = vcombine.low %v1698, %v1712
    %v1721 = vcombine.high %v1698, %v1712
    %v1722 = vcombine.low %v1705, %v1719
    %v1723 = vcombine.high %v1705, %v1719
    %v1724 = vcombine.low %v1596, %v1597
    %v1725 = vcombine.high %v1596, %v1597
    %v1726 = vcombine.low %v1598, %v1599
    %v1727 = vcombine.high %v1598, %v1599
    %v1729 = vunpack.c.l.s4 1983009808
    %v1730 = vunpack.c.0.s8 %v1729
    %v1731 = vlaneseq
    %v1732 = vshrl.u32 %v1731, 7
    %v1733 = vsub.s32 %v1730, %v1732
    %v1734 = vrot.slane %v1724, %v1733
    %v1736 = vunpack.c.l.s4 1983009808
    %v1737 = vunpack.c.0.s8 %v1736
    %v1738 = vlaneseq
    %v1739 = vshrl.u32 %v1738, 7
    %v1740 = vsub.s32 %v1737, %v1739
    %v1741 = vrot.slane %v1725, %v1740
    %v1743 = vunpack.c.l.s4 1983009808
    %v1744 = vunpack.c.0.s8 %v1743
    %v1745 = vlaneseq
    %v1746 = vshrl.u32 %v1745, 7
    %v1747 = vsub.s32 %v1744, %v1746
    %v1748 = vrot.slane %v1726, %v1747
    %v1750 = vunpack.c.l.s4 1983009808
    %v1751 = vunpack.c.0.s8 %v1750
    %v1752 = vlaneseq
    %v1753 = vshrl.u32 %v1752, 7
    %v1754 = vsub.s32 %v1751, %v1753
    %v1755 = vrot.slane %v1727, %v1754
    %v1756 = vcombine.low %v1734, %v1748
    %v1757 = vcombine.high %v1734, %v1748
    %v1758 = vcombine.low %v1741, %v1755
    %v1759 = vcombine.high %v1741, %v1755
    %v1776 = vadd.f32 %v101, %v1648
    %v1777 = vadd.f32 %v102, %v1684
    %v1778 = vadd.f32 %v103, %v1649
    %v1779 = vadd.f32 %v104, %v1685
    %v1780 = vadd.f32 %v105, %v1650
    %v1781 = vadd.f32 %v106, %v1686
    %v1782 = vadd.f32 %v107, %v1651
    %v1783 = vadd.f32 %v108, %v1687
    %v1784 = vadd.f32 %v109, %v1720
    %v1785 = vadd.f32 %v110, %v1756
    %v1786 = vadd.f32 %v111, %v1721
    %v1787 = vadd.f32 %v112, %v1757
    %v1788 = vadd.f32 %v113, %v1722
    %v1789 = vadd.f32 %v114, %v1758
    %v1790 = vadd.f32 %v115, %v1723
    %v1791 = vadd.f32 %v116, %v1759
    %v1808 = vcombine.low %v1776, %v1778
    %v1809 = vcombine.high %v1776, %v1778
    %v1810 = vcombine.low %v1780, %v1782
    %v1811 = vcombine.high %v1780, %v1782
    %v1813 = vunpack.c.l.s4 1983009808
    %v1814 = vunpack.c.0.s8 %v1813
    %v1815 = vlaneseq
    %v1816 = vshrl.u32 %v1815, 7
    %v1817 = vsub.s32 %v1814, %v1816
    %v1818 = vrot.slane %v1808, %v1817
    %v1820 = vunpack.c.l.s4 1983009808
    %v1821 = vunpack.c.0.s8 %v1820
    %v1822 = vlaneseq
    %v1823 = vshrl.u32 %v1822, 7
    %v1824 = vsub.s32 %v1821, %v1823
    %v1825 = vrot.slane %v1809, %v1824
    %v1827 = vunpack.c.l.s4 1983009808
    %v1828 = vunpack.c.0.s8 %v1827
    %v1829 = vlaneseq
    %v1830 = vshrl.u32 %v1829, 7
    %v1831 = vsub.s32 %v1828, %v1830
    %v1832 = vrot.slane %v1810, %v1831
    %v1834 = vunpack.c.l.s4 1983009808
    %v1835 = vunpack.c.0.s8 %v1834
    %v1836 = vlaneseq
    %v1837 = vshrl.u32 %v1836, 7
    %v1838 = vsub.s32 %v1835, %v1837
    %v1839 = vrot.slane %v1811, %v1838
    %v1840 = vcombine.low %v1818, %v1832
    %v1841 = vcombine.high %v1818, %v1832
    %v1842 = vcombine.low %v1825, %v1839
    %v1843 = vcombine.high %v1825, %v1839
    %v1844 = vcombine.low %v1777, %v1779
    %v1845 = vcombine.high %v1777, %v1779
    %v1846 = vcombine.low %v1781, %v1783
    %v1847 = vcombine.high %v1781, %v1783
    %v1849 = vunpack.c.l.s4 1983009808
    %v1850 = vunpack.c.0.s8 %v1849
    %v1851 = vlaneseq
    %v1852 = vshrl.u32 %v1851, 7
    %v1853 = vsub.s32 %v1850, %v1852
    %v1854 = vrot.slane %v1844, %v1853
    %v1856 = vunpack.c.l.s4 1983009808
    %v1857 = vunpack.c.0.s8 %v1856
    %v1858 = vlaneseq
    %v1859 = vshrl.u32 %v1858, 7
    %v1860 = vsub.s32 %v1857, %v1859
    %v1861 = vrot.slane %v1845, %v1860
    %v1863 = vunpack.c.l.s4 1983009808
    %v1864 = vunpack.c.0.s8 %v1863
    %v1865 = vlaneseq
    %v1866 = vshrl.u32 %v1865, 7
    %v1867 = vsub.s32 %v1864, %v1866
    %v1868 = vrot.slane %v1846, %v1867
    %v1870 = vunpack.c.l.s4 1983009808
    %v1871 = vunpack.c.0.s8 %v1870
    %v1872 = vlaneseq
    %v1873 = vshrl.u32 %v1872, 7
    %v1874 = vsub.s32 %v1871, %v1873
    %v1875 = vrot.slane %v1847, %v1874
    %v1876 = vcombine.low %v1854, %v1868
    %v1877 = vcombine.high %v1854, %v1868
    %v1878 = vcombine.low %v1861, %v1875
    %v1879 = vcombine.high %v1861, %v1875
    %v1880 = vcombine.low %v1784, %v1786
    %v1881 = vcombine.high %v1784, %v1786
    %v1882 = vcombine.low %v1788, %v1790
    %v1883 = vcombine.high %v1788, %v1790
    %v1885 = vunpack.c.l.s4 1983009808
    %v1886 = vunpack.c.0.s8 %v1885
    %v1887 = vlaneseq
    %v1888 = vshrl.u32 %v1887, 7
    %v1889 = vsub.s32 %v1886, %v1888
    %v1890 = vrot.slane %v1880, %v1889
    %v1892 = vunpack.c.l.s4 1983009808
    %v1893 = vunpack.c.0.s8 %v1892
    %v1894 = vlaneseq
    %v1895 = vshrl.u32 %v1894, 7
    %v1896 = vsub.s32 %v1893, %v1895
    %v1897 = vrot.slane %v1881, %v1896
    %v1899 = vunpack.c.l.s4 1983009808
    %v1900 = vunpack.c.0.s8 %v1899
    %v1901 = vlaneseq
    %v1902 = vshrl.u32 %v1901, 7
    %v1903 = vsub.s32 %v1900, %v1902
    %v1904 = vrot.slane %v1882, %v1903
    %v1906 = vunpack.c.l.s4 1983009808
    %v1907 = vunpack.c.0.s8 %v1906
    %v1908 = vlaneseq
    %v1909 = vshrl.u32 %v1908, 7
    %v1910 = vsub.s32 %v1907, %v1909
    %v1911 = vrot.slane %v1883, %v1910
    %v1912 = vcombine.low %v1890, %v1904
    %v1913 = vcombine.high %v1890, %v1904
    %v1914 = vcombine.low %v1897, %v1911
    %v1915 = vcombine.high %v1897, %v1911
    %v1916 = vcombine.low %v1785, %v1787
    %v1917 = vcombine.high %v1785, %v1787
    %v1918 = vcombine.low %v1789, %v1791
    %v1919 = vcombine.high %v1789, %v1791
    %v1921 = vunpack.c.l.s4 1983009808
    %v1922 = vunpack.c.0.s8 %v1921
    %v1923 = vlaneseq
    %v1924 = vshrl.u32 %v1923, 7
    %v1925 = vsub.s32 %v1922, %v1924
    %v1926 = vrot.slane %v1916, %v1925
    %v1928 = vunpack.c.l.s4 1983009808
    %v1929 = vunpack.c.0.s8 %v1928
    %v1930 = vlaneseq
    %v1931 = vshrl.u32 %v1930, 7
    %v1932 = vsub.s32 %v1929, %v1931
    %v1933 = vrot.slane %v1917, %v1932
    %v1935 = vunpack.c.l.s4 1983009808
    %v1936 = vunpack.c.0.s8 %v1935
    %v1937 = vlaneseq
    %v1938 = vshrl.u32 %v1937, 7
    %v1939 = vsub.s32 %v1936, %v1938
    %v1940 = vrot.slane %v1918, %v1939
    %v1942 = vunpack.c.l.s4 1983009808
    %v1943 = vunpack.c.0.s8 %v1942
    %v1944 = vlaneseq
    %v1945 = vshrl.u32 %v1944, 7
    %v1946 = vsub.s32 %v1943, %v1945
    %v1947 = vrot.slane %v1919, %v1946
    %v1948 = vcombine.low %v1926, %v1940
    %v1949 = vcombine.high %v1926, %v1940
    %v1950 = vcombine.low %v1933, %v1947
    %v1951 = vcombine.high %v1933, %v1947
    %v1968 = vpack.c.bf16 %v1912, %v1840
    %v1969 = vpack.c.bf16 %v1913, %v1841
    %v1970 = vpack.c.bf16 %v1914, %v1842
    %v1971 = vpack.c.bf16 %v1915, %v1843
    %v1972 = vpack.c.bf16 %v1948, %v1876
    %v1973 = vpack.c.bf16 %v1949, %v1877
    %v1974 = vpack.c.bf16 %v1950, %v1878
    %v1975 = vpack.c.bf16 %v1951, %v1879
    %v1976 = vmul.f32 %v1577, %v137
    %v1977 = vmul.f32 %v1582, %v138
    %v1978 = vadd.f32 %v135, %v1976
    %v1979 = vadd.f32 %v136, %v1977
    %1980 = vmatprep.subr.bf16.mxu0 0
    %1981 = vmatpush1.bf16.msra.mxu0 %v1131
    %1982 = vmatprep.subr.bf16.mxu0 0
    %1983 = vmatpush1.bf16.msra.mxu0 %v1132
    %1984 = vmatprep.subr.bf16.mxu0 0
    %1985 = vmatpush1.bf16.msra.mxu0 %v1133
    %1986 = vmatprep.subr.bf16.mxu0 0
    %1987 = vmatpush1.bf16.msra.mxu0 %v1134
    %1988 = vmatprep.subr.bf16.mxu0 0
    %1989 = vmatpush1.bf16.msra.mxu0 %v1135
    %1990 = vmatprep.subr.bf16.mxu0 0
    %1991 = vmatpush1.bf16.msra.mxu0 %v1136
    %1992 = vmatprep.subr.bf16.mxu0 0
    %1993 = vmatpush1.bf16.msra.mxu0 %v1137
    %1994 = vmatprep.subr.bf16.mxu0 0
    %1995 = vmatpush1.bf16.msra.mxu0 %v1138
    %1996 = vmatprep.subr.bf16.mxu0 0
    %1997 = vmatpush1.bf16.msra.mxu0 %v1139
    %1998 = vmatprep.subr.bf16.mxu0 0
    %1999 = vmatpush1.bf16.msra.mxu0 %v1140
    %2000 = vmatprep.subr.bf16.mxu0 0
    %2001 = vmatpush1.bf16.msra.mxu0 %v1141
    %2002 = vmatprep.subr.bf16.mxu0 0
    %2003 = vmatpush1.bf16.msra.mxu0 %v1142
    %2004 = vmatprep.subr.bf16.mxu0 0
    %2005 = vmatpush1.bf16.msra.mxu0 %v1143
    %2006 = vmatprep.subr.bf16.mxu0 0
    %2007 = vmatpush1.bf16.msra.mxu0 %v1144
    %2008 = vmatprep.subr.bf16.mxu0 0
    %2009 = vmatpush1.bf16.msra.mxu0 %v1145
    %2010 = vmatprep.subr.bf16.mxu0 0
    %2011 = vmatpush1.bf16.msra.mxu0 %v1146
    %2012 = vmatprep.mubr.bf16.mxu0 %v1969
    %2013 = vmatmul.mubr.bf16.gmra.mrb[0].mxu0 %v1968
    %v2014 = vpop.f32.mrb[0].mxu0
    %v2015 = vadd.f32 %v873, %v2014
    %v2016 = vpop.f32.mrb[0].mxu0
    %v2017 = vpop.f32.mrb[0].mxu0
    %v2018 = vadd.f32 %v873, %v2017
    %v2019 = vpop.f32.mrb[0].mxu0
    %2020 = vdwg.mxu0
    %2021 = vmatprep.subr.bf16.mxu0 0
    %2022 = vmatpush1.bf16.msra.mxu0 %v1147
    %2023 = vmatprep.subr.bf16.mxu0 0
    %2024 = vmatpush1.bf16.msra.mxu0 %v1148
    %2025 = vmatprep.subr.bf16.mxu0 0
    %2026 = vmatpush1.bf16.msra.mxu0 %v1149
    %2027 = vmatprep.subr.bf16.mxu0 0
    %2028 = vmatpush1.bf16.msra.mxu0 %v1150
    %2029 = vmatprep.subr.bf16.mxu0 0
    %2030 = vmatpush1.bf16.msra.mxu0 %v1151
    %2031 = vmatprep.subr.bf16.mxu0 0
    %2032 = vmatpush1.bf16.msra.mxu0 %v1152
    %2033 = vmatprep.subr.bf16.mxu0 0
    %2034 = vmatpush1.bf16.msra.mxu0 %v1153
    %2035 = vmatprep.subr.bf16.mxu0 0
    %2036 = vmatpush1.bf16.msra.mxu0 %v1154
    %2037 = vmatprep.subr.bf16.mxu0 0
    %2038 = vmatpush1.bf16.msra.mxu0 %v1155
    %2039 = vmatprep.subr.bf16.mxu0 0
    %2040 = vmatpush1.bf16.msra.mxu0 %v1156
    %2041 = vmatprep.subr.bf16.mxu0 0
    %2042 = vmatpush1.bf16.msra.mxu0 %v1157
    %2043 = vmatprep.subr.bf16.mxu0 0
    %2044 = vmatpush1.bf16.msra.mxu0 %v1158
    %2045 = vmatprep.subr.bf16.mxu0 0
    %2046 = vmatpush1.bf16.msra.mxu0 %v1159
    %2047 = vmatprep.subr.bf16.mxu0 0
    %2048 = vmatpush1.bf16.msra.mxu0 %v1160
    %2049 = vmatprep.subr.bf16.mxu0 0
    %2050 = vmatpush1.bf16.msra.mxu0 %v1161
    %2051 = vmatprep.subr.bf16.mxu0 0
    %2052 = vmatpush1.bf16.msra.mxu0 %v1162
    %2053 = vmatprep.mubr.bf16.mxu0 %v1971
    %2054 = vmatmul.mubr.bf16.gmra.mrb[0].mxu0 %v1970
    %v2055 = vpop.f32.mrb[0].mxu0
    %v2056 = vadd.f32 %v2015, %v2055
    %v2057 = vpop.f32.mrb[0].mxu0
    %v2058 = vpop.f32.mrb[0].mxu0
    %v2059 = vadd.f32 %v2018, %v2058
    %v2060 = vpop.f32.mrb[0].mxu0
    %2061 = vdwg.mxu0
    %2062 = vmatprep.subr.bf16.mxu0 0
    %2063 = vmatpush1.bf16.msra.mxu0 %v1163
    %2064 = vmatprep.subr.bf16.mxu0 0
    %2065 = vmatpush1.bf16.msra.mxu0 %v1164
    %2066 = vmatprep.subr.bf16.mxu0 0
    %2067 = vmatpush1.bf16.msra.mxu0 %v1165
    %2068 = vmatprep.subr.bf16.mxu0 0
    %2069 = vmatpush1.bf16.msra.mxu0 %v1166
    %2070 = vmatprep.subr.bf16.mxu0 0
    %2071 = vmatpush1.bf16.msra.mxu0 %v1167
    %2072 = vmatprep.subr.bf16.mxu0 0
    %2073 = vmatpush1.bf16.msra.mxu0 %v1168
    %2074 = vmatprep.subr.bf16.mxu0 0
    %2075 = vmatpush1.bf16.msra.mxu0 %v1169
    %2076 = vmatprep.subr.bf16.mxu0 0
    %2077 = vmatpush1.bf16.msra.mxu0 %v1170
    %2078 = vmatprep.subr.bf16.mxu0 0
    %2079 = vmatpush1.bf16.msra.mxu0 %v1171
    %2080 = vmatprep.subr.bf16.mxu0 0
    %2081 = vmatpush1.bf16.msra.mxu0 %v1172
    %2082 = vmatprep.subr.bf16.mxu0 0
    %2083 = vmatpush1.bf16.msra.mxu0 %v1173
    %2084 = vmatprep.subr.bf16.mxu0 0
    %2085 = vmatpush1.bf16.msra.mxu0 %v1174
    %2086 = vmatprep.subr.bf16.mxu0 0
    %2087 = vmatpush1.bf16.msra.mxu0 %v1175
    %2088 = vmatprep.subr.bf16.mxu0 0
    %2089 = vmatpush1.bf16.msra.mxu0 %v1176
    %2090 = vmatprep.subr.bf16.mxu0 0
    %2091 = vmatpush1.bf16.msra.mxu0 %v1177
    %2092 = vmatprep.subr.bf16.mxu0 0
    %2093 = vmatpush1.bf16.msra.mxu0 %v1178
    %2094 = vmatprep.mubr.bf16.mxu0 %v1973
    %2095 = vmatmul.mubr.bf16.gmra.mrb[0].mxu0 %v1972
    %v2096 = vpop.f32.mrb[0].mxu0
    %v2097 = vadd.f32 %v2056, %v2096
    %v2098 = vpop.f32.mrb[0].mxu0
    %v2099 = vpop.f32.mrb[0].mxu0
    %v2100 = vadd.f32 %v2059, %v2099
    %v2101 = vpop.f32.mrb[0].mxu0
    %2102 = vdwg.mxu0
    %2103 = vmatprep.subr.bf16.mxu0 0
    %2104 = vmatpush1.bf16.msra.mxu0 %v1179
    %2105 = vmatprep.subr.bf16.mxu0 0
    %2106 = vmatpush1.bf16.msra.mxu0 %v1180
    %2107 = vmatprep.subr.bf16.mxu0 0
    %2108 = vmatpush1.bf16.msra.mxu0 %v1181
    %2109 = vmatprep.subr.bf16.mxu0 0
    %2110 = vmatpush1.bf16.msra.mxu0 %v1182
    %2111 = vmatprep.subr.bf16.mxu0 0
    %2112 = vmatpush1.bf16.msra.mxu0 %v1183
    %2113 = vmatprep.subr.bf16.mxu0 0
    %2114 = vmatpush1.bf16.msra.mxu0 %v1184
    %2115 = vmatprep.subr.bf16.mxu0 0
    %2116 = vmatpush1.bf16.msra.mxu0 %v1185
    %2117 = vmatprep.subr.bf16.mxu0 0
    %2118 = vmatpush1.bf16.msra.mxu0 %v1186
    %2119 = vmatprep.subr.bf16.mxu0 0
    %2120 = vmatpush1.bf16.msra.mxu0 %v1187
    %2121 = vmatprep.subr.bf16.mxu0 0
    %2122 = vmatpush1.bf16.msra.mxu0 %v1188
    %2123 = vmatprep.subr.bf16.mxu0 0
    %2124 = vmatpush1.bf16.msra.mxu0 %v1189
    %2125 = vmatprep.subr.bf16.mxu0 0
    %2126 = vmatpush1.bf16.msra.mxu0 %v1190
    %2127 = vmatprep.subr.bf16.mxu0 0
    %2128 = vmatpush1.bf16.msra.mxu0 %v1191
    %2129 = vmatprep.subr.bf16.mxu0 0
    %2130 = vmatpush1.bf16.msra.mxu0 %v1192
    %2131 = vmatprep.subr.bf16.mxu0 0
    %2132 = vmatpush1.bf16.msra.mxu0 %v1193
    %2133 = vmatprep.subr.bf16.mxu0 0
    %2134 = vmatpush1.bf16.msra.mxu0 %v1194
    %2135 = vmatprep.mubr.bf16.mxu0 %v1975
    %2136 = vmatmul.mubr.bf16.gmra.mrb[0].mxu0 %v1974
    %v2137 = vpop.f32.mrb[0].mxu0
    %v2138 = vadd.f32 %v2097, %v2137
    %v2139 = vpop.f32.mrb[0].mxu0
    %v2140 = vpop.f32.mrb[0].mxu0
    %v2141 = vadd.f32 %v2100, %v2140
    %v2142 = vpop.f32.mrb[0].mxu0
    %2143 = vdwg.mxu0
    %v2144 = vmax.f32 %v2138, 0.0
    %v2145 = vmax.f32 %v2141, 0.0
    %2146 = vmatprep.subr.mxu0 0.0
    %2147 = vmatpush1.msra.mxu0 %v268
    %2148 = vmatprep.subr.mxu0 0.0
    %2149 = vmatpush1.msra.mxu0 %v269
    %2150 = vmatprep.subr.mxu0 0.0
    %2151 = vmatpush1.msra.mxu0 %v270
    %2152 = vmatprep.subr.mxu0 0.0
    %2153 = vmatpush1.msra.mxu0 %v271
    %2154 = vmatprep.subr.mxu0 0.0
    %2155 = vmatpush1.msra.mxu0 %v272
    %2156 = vmatprep.subr.mxu0 0.0
    %2157 = vmatpush1.msra.mxu0 %v273
    %2158 = vmatprep.subr.mxu0 0.0
    %2159 = vmatpush1.msra.mxu0 %v274
    %2160 = vmatprep.subr.mxu0 0.0
    %2161 = vmatpush1.msra.mxu0 %v275
    %2162 = vmatprep.subr.mxu0 0.0
    %2163 = vmatpush1.msra.mxu0 %v276
    %2164 = vmatprep.subr.mxu0 0.0
    %2165 = vmatpush1.msra.mxu0 %v277
    %2166 = vmatprep.subr.mxu0 0.0
    %2167 = vmatpush1.msra.mxu0 %v278
    %2168 = vmatprep.subr.mxu0 0.0
    %2169 = vmatpush1.msra.mxu0 %v279
    %2170 = vmatprep.subr.mxu0 0.0
    %2171 = vmatpush1.msra.mxu0 %v280
    %2172 = vmatprep.subr.mxu0 0.0
    %2173 = vmatpush1.msra.mxu0 %v281
    %2174 = vmatprep.subr.mxu0 0.0
    %2175 = vmatpush1.msra.mxu0 %v282
    %2176 = vmatprep.subr.mxu0 0.0
    %2177 = vmatpush1.msra.mxu0 %v283
    %2178 = vmatprep.subr.mxu0 0.0
    %2179 = vmatpush1.msra.mxu0 0.0
    %2180 = vmatprep.subr.mxu0 0.0
    %2181 = vmatpush1.msra.mxu0 0.0
    %2182 = vmatprep.subr.mxu0 0.0
    %2183 = vmatpush1.msra.mxu0 0.0
    %2184 = vmatprep.subr.mxu0 0.0
    %2185 = vmatpush1.msra.mxu0 0.0
    %2186 = vmatprep.subr.mxu0 0.0
    %2187 = vmatpush1.msra.mxu0 0.0
    %2188 = vmatprep.subr.mxu0 0.0
    %2189 = vmatpush1.msra.mxu0 0.0
    %2190 = vmatprep.subr.mxu0 0.0
    %2191 = vmatpush1.msra.mxu0 0.0
    %2192 = vmatprep.subr.mxu0 0.0
    %2193 = vmatpush1.msra.mxu0 0.0
    %2194 = vmatprep.subr.mxu0 0.0
    %2195 = vmatpush1.msra.mxu0 0.0
    %2196 = vmatprep.subr.mxu0 0.0
    %2197 = vmatpush1.msra.mxu0 0.0
    %2198 = vmatprep.subr.mxu0 0.0
    %2199 = vmatpush1.msra.mxu0 0.0
    %2200 = vmatprep.subr.mxu0 0.0
    %2201 = vmatpush1.msra.mxu0 0.0
    %2202 = vmatprep.subr.mxu0 0.0
    %2203 = vmatpush1.msra.mxu0 0.0
    %2204 = vmatprep.subr.mxu0 0.0
    %2205 = vmatpush1.msra.mxu0 0.0
    %2206 = vmatprep.subr.mxu0 0.0
    %2207 = vmatpush1.msra.mxu0 0.0
    %2208 = vmatprep.subr.mxu0 0.0
    %2209 = vmatpush1.msra.mxu0 0.0
    %2210 = vmatprep.mubr.f32.mxu0 0.0
    %2211 = vmatmul.mubr.f32.gmra.mrb[0].mxu0 %v2144
    %v2212 = vpop.f32.mrb[0].mxu0
    %v2213 = vadd.f32 %v1429, %v2212
    %v2214 = vpop.f32.mrb[0].mxu0
    %2215 = vmatprep.mubr.f32.mxu0 0.0
    %2216 = vmatmul.mubr.f32.gmra.mrb[0].mxu0 %v2145
    %v2217 = vpop.f32.mrb[0].mxu0
    %v2218 = vadd.f32 %v1429, %v2217
    %v2219 = vpop.f32.mrb[0].mxu0
    %2220 = vdwg.mxu0
    %v2221 = vsel %vm1506, %v1978, -inf
    %2222 = vmax.xlane.f32.xlu0 %v2221
    %v2223 = vpop.xlane.xlu0 %2222
    %v2224 = vsel %vm1506, %v1979, -inf
    %2225 = vmax.xlane.f32.xlu0 %v2224
    %v2226 = vpop.xlane.xlu0 %2225
    %v2227 = vsub.f32 %v1978, %v2223
    %v2228 = vsub.f32 %v1979, %v2226
    %v2229 = vmul.f32 %v2227, 1.442695
    %v2230 = vpow.pop %v2229
    %v2231 = vmul.f32 %v2228, 1.442695
    %v2232 = vpow.pop %v2231
    %v2233 = vsel %vm1506, %v2230, 0.0
    %2234 = vadd.xlane.f32.xlu0 %v2233
    %v2235 = vpop.xlane.xlu0 %2234
    %v2236 = vsel %vm1506, %v2232, 0.0
    %2237 = vadd.xlane.f32.xlu0 %v2236
    %v2238 = vpop.xlane.xlu0 %2237
    %v2239 = vlog2.pop %v2235
    %v2240 = vmul.f32 %v2239, 0.6931472
    %v2241 = vlog2.pop %v2238
    %v2242 = vmul.f32 %v2241, 0.6931472
    %v2243 = vsub.f32 %v2227, %v2240
    %v2244 = vsub.f32 %v2228, %v2242
    %v2245 = vsel %vm1506, %v2213, -inf
    %2246 = vmax.xlane.f32.xlu0 %v2245
    %v2247 = vpop.xlane.xlu0 %2246
    %v2248 = vsel %vm1506, %v2218, -inf
    %2249 = vmax.xlane.f32.xlu0 %v2248
    %v2250 = vpop.xlane.xlu0 %2249
    %v2251 = vsub.f32 %v2213, %v2247
    %v2252 = vsub.f32 %v2218, %v2250
    %v2253 = vmul.f32 %v2251, 1.442695
    %v2254 = vpow.pop %v2253
    %v2255 = vmul.f32 %v2252, 1.442695
    %v2256 = vpow.pop %v2255
    %v2257 = vsel %vm1506, %v2254, 0.0
    %2258 = vadd.xlane.f32.xlu0 %v2257
    %v2259 = vpop.xlane.xlu0 %2258
    %v2260 = vsel %vm1506, %v2256, 0.0
    %2261 = vadd.xlane.f32.xlu0 %v2260
    %v2262 = vpop.xlane.xlu0 %2261
    %v2263 = vlog2.pop %v2259
    %v2264 = vmul.f32 %v2263, 0.6931472
    %v2265 = vlog2.pop %v2262
    %v2266 = vmul.f32 %v2265, 0.6931472
    %v2267 = vsub.f32 %v2251, %v2264
    %v2268 = vsub.f32 %v2252, %v2266
    %v2269 = vmul.f32 %v2243, 1.442695
    %v2270 = vpow.pop %v2269
    %v2271 = vmul.f32 %v2244, 1.442695
    %v2272 = vpow.pop %v2271
    %v2273 = vsub.f32 %v2243, %v2267
    %v2274 = vsub.f32 %v2244, %v2268
    %v2275 = vmul.f32 %v2270, %v2273
    %v2276 = vmul.f32 %v2272, %v2274
    %v2277 = vsel %vm1506, %v2275, 0.0
    %2278 = vadd.xlane.f32.xlu0 %v2277
    %v2279 = vpop.xlane.xlu0 %2278
    %v2280 = vsel %vm1506, %v2276, 0.0
    %2281 = vadd.xlane.f32.xlu0 %v2280
    %v2282 = vpop.xlane.xlu0 %2281
    %v2283 = vadd.f32 %v1569, %v2279
    %v2284 = vadd.f32 %v1570, %v2282
    %v2285 = vlaneseq
    %v2286 = vshrl.u32 %v2285, 7
    %v2287 = vadd.s32 %v2286, 8
    %s2288 = smul.u32 0, 16
    %v2289 = vstv %s2288
    %v2290 = vadd.s32 %v2286, %v2289
    %v2291 = vadd.s32 %v2287, %v2289
    %vm2292 = vcmp.lt.s32.totalorder %v2290, 2
    %vm2293 = vcmp.lt.s32.totalorder %v2291, 2
    %v2294 = vsel %vm2292, %v2283, 0.0
    %v2295 = vsel %vm2293, %v2284, 0.0
    %vm2296 = vcmask 7168
    %v2297 = vsel %vm2296, %v2294, 0.0
    %v2298 = vsel %vm2296, %v2295, 0.0
    %v2299 = vadd.f32 %v2297, %v2298
    %2300 = vadd.xlane.f32.xlu0 %v2299
    %v2301 = vpop.xlane.xlu0 %2300
    %v2302 = vrot.slane %v2301, 4
    %v2303 = vadd.f32 %v2301, %v2302
    %v2304 = vrot.slane %v2303, 2
    %v2305 = vadd.f32 %v2303, %v2304
    %v2306 = vrot.slane %v2305, 1
    %v2307 = vadd.f32 %v2305, %v2306
    %s2308 = vtos %v2307
    %v2309 = vstv %s2308
    %2310 = vst [vmem:[#allocation6] sm:$0xff] %v2309
    // Predicated region
    $region76: #{tpu_custom_call.1} parent=1 // pred_check
      _
    $region77: #{tpu_custom_call.1} parent=1 // pred_check_branch
      %2312 = sbr.rel (0) target = $region79
    $region78: #{tpu_custom_call.1} parent=1 // pred_region
      %s2314 = ssub.s32 128, 128
      %2315 = vsyncadd [#allocation5], %s2314
      %s2317 = sshll.u32 [#allocation6], 4
      %s2318 = int_to_ptr.vmem [resolvable:$true] %s2317
      %2320 = dma.vmem_to_hbm [thread:$0]  %s2318, 128, %s9, [#allocation5]
    $region79: #{tpu_custom_call.1} parent=1 // pred_fallthru
      _
    // Predicated region
    $region80: #{tpu_custom_call.1} parent=1 // pred_check
      _
    $region81: #{tpu_custom_call.1} parent=1 // pred_check_branch
      %2322 = sbr.rel (0) target = $region83
    $region82: #{tpu_custom_call.1} parent=1 // pred_region
      %2323 = dma.done [#allocation5], 128
    $region83: #{tpu_custom_call.1} parent=1 // pred_fallthru
      _
    %2324 = vsyncpa [#allocation4], 1
    %2325 = vsyncpa [#allocation5], 1

</llo_original>
